<compile_context>
chip_gen: v5e
topology: v5e:2x2
jax: 0.10.0
libtpu: 0.0.40
codegen_flags: <defaults>
</compile_context>

<pallas_src>
import functools

import numpy as np

import jax
import jax.numpy as jnp
from jax.experimental import pallas as pl
from jax.experimental.pallas import tpu as pltpu


def _round_up(v, m):
    return ((v + m - 1) // m) * m


def _build_schedule(g, num_cores):
    """Balanced triangular (i, j) schedule; one contiguous j-run per row.

    Returns flat int32 arrays i_idx, j_idx, flag of length num_cores * steps
    plus steps (steps per core).  flag: 2 = diagonal tile (init + triangle
    mask), 1 = off-diagonal tile (accumulate), 0 = padding step (skip).
    """
    core_rows = [[] for _ in range(num_cores)]
    load = [0] * num_cores
    for i in range(g):                       # row i has g - i active blocks
        c = int(np.argmin(load))
        core_rows[c].append(i)
        load[c] += g - i
    per_core = []
    for c in range(num_cores):
        steps = []
        for i in core_rows[c]:
            for j in range(i, g):
                steps.append((i, j, 2 if j == i else 1))
        per_core.append(steps)
    steps_per_core = max(len(s) for s in per_core)
    i_idx = np.zeros((num_cores, steps_per_core), np.int32)
    j_idx = np.zeros((num_cores, steps_per_core), np.int32)
    flag = np.zeros((num_cores, steps_per_core), np.int32)
    for c, steps in enumerate(per_core):
        last = steps[-1]
        for s in range(steps_per_core):
            i, j, f = steps[s] if s < len(steps) else (last[0], last[1], 0)
            i_idx[c, s], j_idx[c, s], flag[c, s] = i, j, f
    return i_idx.reshape(-1), j_idx.reshape(-1), flag.reshape(-1), steps_per_core


def _rows_to_sublane_groups(vals, tile):
    """Reduce (t, t) -> (8, t) with a tree of sublane-aligned vreg adds."""
    parts = [vals[r * 8:(r + 1) * 8, :] for r in range(tile // 8)]
    while len(parts) > 1:
        nxt = [parts[k] + parts[k + 1] for k in range(0, len(parts) - 1, 2)]
        if len(parts) % 2:
            nxt.append(parts[-1])
        parts = nxt
    return parts[0]


def _clothmse_kernel(i_sref, j_sref, f_sref, *refs, distance, tile,
                     steps_per_core):
    del i_sref, j_sref                      # consumed only by the index_maps
    if distance == "euclidean":
        xi_ref, xj_ref, ai_ref, aj_ref, ti_ref, tj_ref, ci_ref, cj_ref, o_ref = refs
    else:
        xi_ref, xj_ref, ti_ref, tj_ref, ci_ref, cj_ref, o_ref = refs

    c = pl.program_id(0)
    s = pl.program_id(1)
    flag = f_sref[c * steps_per_core + s]

    def tile_compute(diagonal):
        # lhs @ rhs^T on the MXU: bf16 inputs, f32 accumulation, no transpose.
        gram = jax.lax.dot_general(
            xi_ref[...], xj_ref[...],
            dimension_numbers=(((1,), (1,)), ((), ())),
            preferred_element_type=jnp.float32)               # (t, t) f32

        if distance == "euclidean":
            d2 = ai_ref[...] + aj_ref[...] - 2.0 * gram       # (t,1)+(1,t) splats
            dist = jnp.sqrt(jnp.maximum(d2, 1e-12))
        else:                                                 # x pre-normalised
            dist = -gram

        cam_prod = ci_ref[...] * cj_ref[...]                  # int32 (t, t)
        sel = (ti_ref[...] == tj_ref[...]) & (
            (cam_prod == 3) | (cam_prod == 6))
        if diagonal:
            # Strict upper triangle only matters on diagonal tiles; local
            # iotas suffice (row/col global offsets coincide there).
            row_l = jax.lax.broadcasted_iota(jnp.int32, (tile, tile), 0)
            col_l = jax.lax.broadcasted_iota(jnp.int32, (tile, tile), 1)
            sel = sel & (col_l > row_l)

        vals = jnp.where(sel, dist, 0.0)
        part = _rows_to_sublane_groups(vals, tile).reshape(1, 8, tile)
        if diagonal:         # first tile of this row: init the resident block
            o_ref[...] = part
        else:
            o_ref[...] += part

    @pl.when(flag == 2)      # diagonal tile == first tile of a row
    def _():
        tile_compute(True)

    @pl.when(flag == 1)      # strictly off-diagonal tile
    def _():
        tile_compute(False)
    # flag == 0: padding step (TensorCore load balancing) — nothing to do;
    # the index_maps repeat the previous (i, j) so no fresh DMA is issued.


def clothmse_loss(inputs, targets, cams, distance="euclidean", tile=256):
    """Forward pass of the PyTorch `clothmse` module."""
    if distance not in ("euclidean", "cosine"):
        raise KeyError("Unsupported distance: {}".format(distance))

    n, d = inputs.shape
    # Lane-aligned tile, clamped to [128, 512] (default 256; 512 only pays off
    # on v5e/v6e's 128 MiB VMEM — keep 256 on v7x).
    t = max(128, min(512, (int(tile) // 128) * 128))
    t = min(t, _round_up(n, 128))
    n_pad = _round_up(n, t)
    pad = n_pad - n
    g = n_pad // t

    x = inputs.astype(jnp.float32)
    if distance == "cosine":
        nrm = jnp.sqrt(jnp.sum(x * x, axis=1, keepdims=True))
        x = x / jnp.maximum(nrm, 1e-12)       # normalise once, O(n*d)
    x = jnp.pad(x, ((0, pad), (0, 0)))
    x_bf = x.astype(jnp.bfloat16)             # bf16 Gram (f32 accumulation)

    # Padded rows: cams == 0 so the camera product can never hit 3 or 6.
    tg = jnp.pad(targets.astype(jnp.int32), (0, pad), constant_values=-1)
    cm = jnp.pad(cams.astype(jnp.int32), (0, pad), constant_values=0)

    # Triangular, core-balanced schedule (scalar-prefetched into SMEM).
    num_cores = 2 if g >= 2 else 1
    i_np, j_np, f_np, steps = _build_schedule(g, num_cores)
    i_sched, j_sched, f_sched = jnp.asarray(i_np), jnp.asarray(j_np), jnp.asarray(f_np)

    def row_map(c, s, i_s, j_s, f_s):
        return (i_s[c * steps + s], 0)

    def col_mat_map(c, s, i_s, j_s, f_s):
        return (j_s[c * steps + s], 0)

    def col_vec_map(c, s, i_s, j_s, f_s):
        return (0, j_s[c * steps + s])

    def out_map(c, s, i_s, j_s, f_s):
        return (i_s[c * steps + s], 0, 0)

    # TODO(synk): if profiling shows exposed column-block DMA at row
    # boundaries, add pipeline_mode=pl.Buffered(3) to the streamed col specs.
    operands = [x_bf, x_bf]
    in_specs = [pl.BlockSpec((t, d), row_map),        # x row block (resident/row)
                pl.BlockSpec((t, d), col_mat_map)]    # x col block (streamed)
    if distance == "euclidean":
        aux = jnp.sum(x * x, axis=1).astype(jnp.float32)      # squared norms
        operands += [aux.reshape(n_pad, 1), aux.reshape(1, n_pad)]
        in_specs += [pl.BlockSpec((t, 1), row_map),
                     pl.BlockSpec((1, t), col_vec_map)]
    operands += [tg.reshape(n_pad, 1), tg.reshape(1, n_pad),
                 cm.reshape(n_pad, 1), cm.reshape(1, n_pad)]
    in_specs += [pl.BlockSpec((t, 1), row_map), pl.BlockSpec((1, t), col_vec_map),
                 pl.BlockSpec((t, 1), row_map), pl.BlockSpec((1, t), col_vec_map)]

    # VMEM limit derived from the actual footprint (double-buffered x blocks +
    # (t, t) epilogue temporaries + resident output), clamped to 64 MiB so it
    # stays within v7x's physical VMEM.
    est = (2 * 2 * t * d * 2              # xi/xj bf16, double-buffered
           + 8 * t * t * 4                # gram/dist/mask temporaries
           + 2 * 8 * t * 4                # resident (1, 8, t) output block
           + 12 * 2 * t * 4               # small row/col vectors
           + (8 << 20))                   # headroom
    vmem_limit = int(min(64 << 20, max(32 << 20, est)))

    kernel = functools.partial(_clothmse_kernel, distance=distance, tile=t,
                               steps_per_core=steps)

    out = pl.pallas_call(
        kernel,
        out_shape=jax.ShapeDtypeStruct((g, 8, t), jnp.float32),
        grid_spec=pltpu.PrefetchScalarGridSpec(
            num_scalar_prefetch=3,
            grid=(num_cores, steps),
            in_specs=in_specs,
            out_specs=pl.BlockSpec((1, 8, t), out_map),
        ),
        compiler_params=pltpu.CompilerParams(
            dimension_semantics=("parallel", "arbitrary"),
            vmem_limit_bytes=vmem_limit,
        ),
    )(i_sched, j_sched, f_sched, *operands)

    # Single cross-sublane + cross-lane reduce of the per-row partial sums.
    return jnp.sum(out)


def _reference_loss(inputs, targets, cams, distance="euclidean"):
    """Plain-JAX reference mirroring the PyTorch forward."""
    x = inputs.astype(jnp.float32)
    n = x.shape[0]
    if distance == "euclidean":
        sq = jnp.sum(x * x, axis=1, keepdims=True)
        dist2 = sq + sq.T - 2.0 * (x @ x.T)
        dist = jnp.sqrt(jnp.maximum(dist2, 1e-12))
    else:
        nrm = jnp.sqrt(jnp.sum(x * x, axis=1, keepdims=True))
        xn = x / jnp.maximum(nrm, 1e-12)
        dist = -(xn @ xn.T)
    t = targets
    c = cams.astype(jnp.float32)
    mask_1 = (t[:, None] == t[None, :]).astype(jnp.float32)
    cam_mask = c[:, None] * c[None, :] * mask_1
    cam_mask = cam_mask * jnp.triu(jnp.ones((n, n), jnp.float32), k=1)
    sel = (cam_mask == 3.0) | (cam_mask == 6.0)
    return jnp.sum(jnp.where(sel, dist, 0.0))


def _check_close(loss, ref, n, label):
    # bf16 Gram on the MXU: per-pair error is ~1e-3 and the loss sums O(n^2)
    # selected pairs, so scale the tolerance with n rather than with the
    # (possibly cancelling) net value.
    tol = 5e-3 * abs(float(ref)) + 2e-3 * n + 5e-2
    err = abs(float(loss) - float(ref))
    assert err <= tol, (label, float(loss), float(ref), err, tol)


if __name__ == "__main__":
    base = jax.random.PRNGKey(0)
    # (n, d, tile): single-tile path (g=1), multi-tile path with a padded core
    # schedule (g=2), and a 3-row-block schedule where both cores get rows.
    cases = [(8, 32, 256), (300, 64, 256), (300, 64, 128)]
    for case_id, (n, d, tile) in enumerate(cases):
        k_x, k_t, k_c = jax.random.split(jax.random.fold_in(base, case_id), 3)
        inputs = jax.random.normal(k_x, (n, d), dtype=jnp.float32)
        targets = jax.random.randint(k_t, (n,), 0, 3, dtype=jnp.int32)
        # camera ids drawn from {1, 2, 3} so pairwise products can hit 3 and 6
        cams = jax.random.randint(k_c, (n,), 1, 4, dtype=jnp.int32)
        for dist_kind in ("euclidean", "cosine"):
            loss = jax.block_until_ready(
                clothmse_loss(inputs, targets, cams, distance=dist_kind, tile=tile))
            ref = jax.block_until_ready(
                _reference_loss(inputs, targets, cams, distance=dist_kind))
            _check_close(loss, ref, n, (n, d, tile, dist_kind))
    print("KERNEL_OK")
</pallas_src>

<mosaic_0001>
module attributes {stable_mosaic.version = 11 : i64} {
  func.func @_clothmse_kernel(%arg0: i32, %arg1: i32, %arg2: memref<1xi32, #tpu.memory_space<smem>>, %arg3: memref<1xi32, #tpu.memory_space<smem>>, %arg4: memref<1xi32, #tpu.memory_space<smem>>, %arg5: memref<128x32xbf16, #tpu.memory_space<vmem>>, %arg6: memref<128x32xbf16, #tpu.memory_space<vmem>>, %arg7: memref<128x1xf32, #tpu.memory_space<vmem>>, %arg8: memref<1x128xf32, #tpu.memory_space<vmem>>, %arg9: memref<128x1xi32, #tpu.memory_space<vmem>>, %arg10: memref<1x128xi32, #tpu.memory_space<vmem>>, %arg11: memref<128x1xi32, #tpu.memory_space<vmem>>, %arg12: memref<1x128xi32, #tpu.memory_space<vmem>>, %arg13: memref<1x8x128xf32, #tpu.memory_space<vmem>>) attributes {dimension_semantics = [#tpu.dimension_semantics<parallel>, #tpu.dimension_semantics<arbitrary>], iteration_bounds = array<i64: 1, 1>, scalar_prefetch = 3 : i64, scratch_operands = 0 : i64, tpu.core_type = #tpu.core_type<tc>, window_params = [{transform_indices = @transform_0, window_bounds = array<i64: 128, 32>}, {transform_indices = @transform_1, window_bounds = array<i64: 128, 32>}, {transform_indices = @transform_2, window_bounds = array<i64: 128, 1>}, {transform_indices = @transform_3, window_bounds = array<i64: 1, 128>}, {transform_indices = @transform_4, window_bounds = array<i64: 128, 1>}, {transform_indices = @transform_5, window_bounds = array<i64: 1, 128>}, {transform_indices = @transform_6, window_bounds = array<i64: 128, 1>}, {transform_indices = @transform_7, window_bounds = array<i64: 1, 128>}, {transform_indices = @transform_8, window_bounds = array<i64: 1, 8, 128>}]} {
    %c1_i32 = arith.constant 1 : i32
    %0 = arith.muli %arg0, %c1_i32 : i32
    %1 = arith.addi %0, %arg1 : i32
    %2 = arith.index_cast %1 : i32 to index
    %3 = memref.load %arg4[%2] : memref<1xi32, #tpu.memory_space<smem>>
    %c2_i32 = arith.constant 2 : i32
    %4 = arith.cmpi eq, %3, %c2_i32 : i32
    %5 = arith.extui %4 : i1 to i32
    %c0_i32 = arith.constant 0 : i32
    %6 = arith.cmpi ne, %5, %c0_i32 : i32
    scf.if %6 {
      %c0 = arith.constant 0 : index
      %c0_2 = arith.constant 0 : index
      %10 = vector.load %arg5[%c0, %c0_2] : memref<128x32xbf16, #tpu.memory_space<vmem>>, vector<128x32xbf16>
      %c0_3 = arith.constant 0 : index
      %c0_4 = arith.constant 0 : index
      %11 = vector.load %arg6[%c0_3, %c0_4] : memref<128x32xbf16, #tpu.memory_space<vmem>>, vector<128x32xbf16>
      %cst = arith.constant dense<0.000000e+00> : vector<128x128xf32>
      %12 = tpu.matmul %10, %11, %cst {dimension_numbers = #tpu.dot_dimension_numbers<[1], [1], [0], [0], [0, 0, 1, 0], [], []>} : vector<128x32xbf16>, vector<128x32xbf16>, vector<128x128xf32> -> vector<128x128xf32>
      %c0_5 = arith.constant 0 : index
      %c0_6 = arith.constant 0 : index
      %13 = vector.load %arg7[%c0_5, %c0_6] : memref<128x1xf32, #tpu.memory_space<vmem>>, vector<128x1xf32>
      %c0_7 = arith.constant 0 : index
      %c0_8 = arith.constant 0 : index
      %14 = vector.load %arg8[%c0_7, %c0_8] : memref<1x128xf32, #tpu.memory_space<vmem>>, vector<1x128xf32>
      %15 = vector.broadcast %13 : vector<128x1xf32> to vector<128x128xf32>
      %16 = vector.broadcast %14 : vector<1x128xf32> to vector<128x128xf32>
      %17 = arith.addf %15, %16 : vector<128x128xf32>
      %cst_9 = arith.constant 2.000000e+00 : f32
      %18 = vector.broadcast %cst_9 : f32 to vector<128x128xf32>
      %19 = arith.mulf %18, %12 : vector<128x128xf32>
      %20 = arith.subf %17, %19 : vector<128x128xf32>
      %cst_10 = arith.constant 9.99999996E-13 : f32
      %21 = vector.broadcast %cst_10 : f32 to vector<128x128xf32>
      %22 = arith.maximumf %20, %21 : vector<128x128xf32>
      %23 = math.sqrt %22 : vector<128x128xf32>
      %c0_11 = arith.constant 0 : index
      %c0_12 = arith.constant 0 : index
      %24 = vector.load %arg11[%c0_11, %c0_12] : memref<128x1xi32, #tpu.memory_space<vmem>>, vector<128x1xi32>
      %c0_13 = arith.constant 0 : index
      %c0_14 = arith.constant 0 : index
      %25 = vector.load %arg12[%c0_13, %c0_14] : memref<1x128xi32, #tpu.memory_space<vmem>>, vector<1x128xi32>
      %26 = vector.broadcast %24 : vector<128x1xi32> to vector<128x128xi32>
      %27 = vector.broadcast %25 : vector<1x128xi32> to vector<128x128xi32>
      %28 = arith.muli %26, %27 : vector<128x128xi32>
      %c0_15 = arith.constant 0 : index
      %c0_16 = arith.constant 0 : index
      %29 = vector.load %arg9[%c0_15, %c0_16] : memref<128x1xi32, #tpu.memory_space<vmem>>, vector<128x1xi32>
      %c0_17 = arith.constant 0 : index
      %c0_18 = arith.constant 0 : index
      %30 = vector.load %arg10[%c0_17, %c0_18] : memref<1x128xi32, #tpu.memory_space<vmem>>, vector<1x128xi32>
      %31 = vector.broadcast %29 : vector<128x1xi32> to vector<128x128xi32>
      %32 = vector.broadcast %30 : vector<1x128xi32> to vector<128x128xi32>
      %33 = arith.cmpi eq, %31, %32 : vector<128x128xi32>
      %c3_i32 = arith.constant 3 : i32
      %34 = vector.broadcast %c3_i32 : i32 to vector<128x128xi32>
      %35 = arith.cmpi eq, %28, %34 : vector<128x128xi32>
      %c6_i32 = arith.constant 6 : i32
      %36 = vector.broadcast %c6_i32 : i32 to vector<128x128xi32>
      %37 = arith.cmpi eq, %28, %36 : vector<128x128xi32>
      %38 = arith.ori %35, %37 : vector<128x128xi1>
      %39 = arith.andi %33, %38 : vector<128x128xi1>
      %40 = tpu.iota {dimensions = array<i32: 0>} : vector<128x128xi32>
      %41 = tpu.iota {dimensions = array<i32: 1>} : vector<128x128xi32>
      %42 = arith.cmpi sgt, %41, %40 : vector<128x128xi32>
      %43 = arith.andi %39, %42 : vector<128x128xi1>
      %cst_19 = arith.constant 0.000000e+00 : f32
      %44 = vector.broadcast %cst_19 : f32 to vector<128x128xf32>
      %45 = arith.select %43, %23, %44 : vector<128x128xi1>, vector<128x128xf32>
      %46 = vector.extract_strided_slice %45 {offsets = [0, 0], sizes = [8, 128], strides = [1, 1]} : vector<128x128xf32> to vector<8x128xf32>
      %47 = vector.extract_strided_slice %45 {offsets = [8, 0], sizes = [8, 128], strides = [1, 1]} : vector<128x128xf32> to vector<8x128xf32>
      %48 = vector.extract_strided_slice %45 {offsets = [16, 0], sizes = [8, 128], strides = [1, 1]} : vector<128x128xf32> to vector<8x128xf32>
      %49 = vector.extract_strided_slice %45 {offsets = [24, 0], sizes = [8, 128], strides = [1, 1]} : vector<128x128xf32> to vector<8x128xf32>
      %50 = vector.extract_strided_slice %45 {offsets = [32, 0], sizes = [8, 128], strides = [1, 1]} : vector<128x128xf32> to vector<8x128xf32>
      %51 = vector.extract_strided_slice %45 {offsets = [40, 0], sizes = [8, 128], strides = [1, 1]} : vector<128x128xf32> to vector<8x128xf32>
      %52 = vector.extract_strided_slice %45 {offsets = [48, 0], sizes = [8, 128], strides = [1, 1]} : vector<128x128xf32> to vector<8x128xf32>
      %53 = vector.extract_strided_slice %45 {offsets = [56, 0], sizes = [8, 128], strides = [1, 1]} : vector<128x128xf32> to vector<8x128xf32>
      %54 = vector.extract_strided_slice %45 {offsets = [64, 0], sizes = [8, 128], strides = [1, 1]} : vector<128x128xf32> to vector<8x128xf32>
      %55 = vector.extract_strided_slice %45 {offsets = [72, 0], sizes = [8, 128], strides = [1, 1]} : vector<128x128xf32> to vector<8x128xf32>
      %56 = vector.extract_strided_slice %45 {offsets = [80, 0], sizes = [8, 128], strides = [1, 1]} : vector<128x128xf32> to vector<8x128xf32>
      %57 = vector.extract_strided_slice %45 {offsets = [88, 0], sizes = [8, 128], strides = [1, 1]} : vector<128x128xf32> to vector<8x128xf32>
      %58 = vector.extract_strided_slice %45 {offsets = [96, 0], sizes = [8, 128], strides = [1, 1]} : vector<128x128xf32> to vector<8x128xf32>
      %59 = vector.extract_strided_slice %45 {offsets = [104, 0], sizes = [8, 128], strides = [1, 1]} : vector<128x128xf32> to vector<8x128xf32>
      %60 = vector.extract_strided_slice %45 {offsets = [112, 0], sizes = [8, 128], strides = [1, 1]} : vector<128x128xf32> to vector<8x128xf32>
      %61 = vector.extract_strided_slice %45 {offsets = [120, 0], sizes = [8, 128], strides = [1, 1]} : vector<128x128xf32> to vector<8x128xf32>
      %62 = arith.addf %46, %47 : vector<8x128xf32>
      %63 = arith.addf %48, %49 : vector<8x128xf32>
      %64 = arith.addf %50, %51 : vector<8x128xf32>
      %65 = arith.addf %52, %53 : vector<8x128xf32>
      %66 = arith.addf %54, %55 : vector<8x128xf32>
      %67 = arith.addf %56, %57 : vector<8x128xf32>
      %68 = arith.addf %58, %59 : vector<8x128xf32>
      %69 = arith.addf %60, %61 : vector<8x128xf32>
      %70 = arith.addf %62, %63 : vector<8x128xf32>
      %71 = arith.addf %64, %65 : vector<8x128xf32>
      %72 = arith.addf %66, %67 : vector<8x128xf32>
      %73 = arith.addf %68, %69 : vector<8x128xf32>
      %74 = arith.addf %70, %71 : vector<8x128xf32>
      %75 = arith.addf %72, %73 : vector<8x128xf32>
      %76 = arith.addf %74, %75 : vector<8x128xf32>
      %77 = vector.shape_cast %76 : vector<8x128xf32> to vector<1x8x128xf32>
      %c0_20 = arith.constant 0 : index
      %c0_21 = arith.constant 0 : index
      %c0_22 = arith.constant 0 : index
      %78 = vector.load %arg13[%c0_20, %c0_21, %c0_22] : memref<1x8x128xf32, #tpu.memory_space<vmem>>, vector<1x8x128xf32>
      tpu.vector_store %arg13[%c0_20, %c0_21, %c0_22], %77 {strides = array<i32>} : memref<1x8x128xf32, #tpu.memory_space<vmem>>, vector<1x8x128xf32>,
    } else {
    }
    %c1_i32_0 = arith.constant 1 : i32
    %7 = arith.cmpi eq, %3, %c1_i32_0 : i32
    %8 = arith.extui %7 : i1 to i32
    %c0_i32_1 = arith.constant 0 : i32
    %9 = arith.cmpi ne, %8, %c0_i32_1 : i32
    scf.if %9 {
      %c0 = arith.constant 0 : index
      %c0_2 = arith.constant 0 : index
      %10 = vector.load %arg5[%c0, %c0_2] : memref<128x32xbf16, #tpu.memory_space<vmem>>, vector<128x32xbf16>
      %c0_3 = arith.constant 0 : index
      %c0_4 = arith.constant 0 : index
      %11 = vector.load %arg6[%c0_3, %c0_4] : memref<128x32xbf16, #tpu.memory_space<vmem>>, vector<128x32xbf16>
      %cst = arith.constant dense<0.000000e+00> : vector<128x128xf32>
      %12 = tpu.matmul %10, %11, %cst {dimension_numbers = #tpu.dot_dimension_numbers<[1], [1], [0], [0], [0, 0, 1, 0], [], []>} : vector<128x32xbf16>, vector<128x32xbf16>, vector<128x128xf32> -> vector<128x128xf32>
      %c0_5 = arith.constant 0 : index
      %c0_6 = arith.constant 0 : index
      %13 = vector.load %arg7[%c0_5, %c0_6] : memref<128x1xf32, #tpu.memory_space<vmem>>, vector<128x1xf32>
      %c0_7 = arith.constant 0 : index
      %c0_8 = arith.constant 0 : index
      %14 = vector.load %arg8[%c0_7, %c0_8] : memref<1x128xf32, #tpu.memory_space<vmem>>, vector<1x128xf32>
      %15 = vector.broadcast %13 : vector<128x1xf32> to vector<128x128xf32>
      %16 = vector.broadcast %14 : vector<1x128xf32> to vector<128x128xf32>
      %17 = arith.addf %15, %16 : vector<128x128xf32>
      %cst_9 = arith.constant 2.000000e+00 : f32
      %18 = vector.broadcast %cst_9 : f32 to vector<128x128xf32>
      %19 = arith.mulf %18, %12 : vector<128x128xf32>
      %20 = arith.subf %17, %19 : vector<128x128xf32>
      %cst_10 = arith.constant 9.99999996E-13 : f32
      %21 = vector.broadcast %cst_10 : f32 to vector<128x128xf32>
      %22 = arith.maximumf %20, %21 : vector<128x128xf32>
      %23 = math.sqrt %22 : vector<128x128xf32>
      %c0_11 = arith.constant 0 : index
      %c0_12 = arith.constant 0 : index
      %24 = vector.load %arg11[%c0_11, %c0_12] : memref<128x1xi32, #tpu.memory_space<vmem>>, vector<128x1xi32>
      %c0_13 = arith.constant 0 : index
      %c0_14 = arith.constant 0 : index
      %25 = vector.load %arg12[%c0_13, %c0_14] : memref<1x128xi32, #tpu.memory_space<vmem>>, vector<1x128xi32>
      %26 = vector.broadcast %24 : vector<128x1xi32> to vector<128x128xi32>
      %27 = vector.broadcast %25 : vector<1x128xi32> to vector<128x128xi32>
      %28 = arith.muli %26, %27 : vector<128x128xi32>
      %c0_15 = arith.constant 0 : index
      %c0_16 = arith.constant 0 : index
      %29 = vector.load %arg9[%c0_15, %c0_16] : memref<128x1xi32, #tpu.memory_space<vmem>>, vector<128x1xi32>
      %c0_17 = arith.constant 0 : index
      %c0_18 = arith.constant 0 : index
      %30 = vector.load %arg10[%c0_17, %c0_18] : memref<1x128xi32, #tpu.memory_space<vmem>>, vector<1x128xi32>
      %31 = vector.broadcast %29 : vector<128x1xi32> to vector<128x128xi32>
      %32 = vector.broadcast %30 : vector<1x128xi32> to vector<128x128xi32>
      %33 = arith.cmpi eq, %31, %32 : vector<128x128xi32>
      %c3_i32 = arith.constant 3 : i32
      %34 = vector.broadcast %c3_i32 : i32 to vector<128x128xi32>
      %35 = arith.cmpi eq, %28, %34 : vector<128x128xi32>
      %c6_i32 = arith.constant 6 : i32
      %36 = vector.broadcast %c6_i32 : i32 to vector<128x128xi32>
      %37 = arith.cmpi eq, %28, %36 : vector<128x128xi32>
      %38 = arith.ori %35, %37 : vector<128x128xi1>
      %39 = arith.andi %33, %38 : vector<128x128xi1>
      %cst_19 = arith.constant 0.000000e+00 : f32
      %40 = vector.broadcast %cst_19 : f32 to vector<128x128xf32>
      %41 = arith.select %39, %23, %40 : vector<128x128xi1>, vector<128x128xf32>
      %42 = vector.extract_strided_slice %41 {offsets = [0, 0], sizes = [8, 128], strides = [1, 1]} : vector<128x128xf32> to vector<8x128xf32>
      %43 = vector.extract_strided_slice %41 {offsets = [8, 0], sizes = [8, 128], strides = [1, 1]} : vector<128x128xf32> to vector<8x128xf32>
      %44 = vector.extract_strided_slice %41 {offsets = [16, 0], sizes = [8, 128], strides = [1, 1]} : vector<128x128xf32> to vector<8x128xf32>
      %45 = vector.extract_strided_slice %41 {offsets = [24, 0], sizes = [8, 128], strides = [1, 1]} : vector<128x128xf32> to vector<8x128xf32>
      %46 = vector.extract_strided_slice %41 {offsets = [32, 0], sizes = [8, 128], strides = [1, 1]} : vector<128x128xf32> to vector<8x128xf32>
      %47 = vector.extract_strided_slice %41 {offsets = [40, 0], sizes = [8, 128], strides = [1, 1]} : vector<128x128xf32> to vector<8x128xf32>
      %48 = vector.extract_strided_slice %41 {offsets = [48, 0], sizes = [8, 128], strides = [1, 1]} : vector<128x128xf32> to vector<8x128xf32>
      %49 = vector.extract_strided_slice %41 {offsets = [56, 0], sizes = [8, 128], strides = [1, 1]} : vector<128x128xf32> to vector<8x128xf32>
      %50 = vector.extract_strided_slice %41 {offsets = [64, 0], sizes = [8, 128], strides = [1, 1]} : vector<128x128xf32> to vector<8x128xf32>
      %51 = vector.extract_strided_slice %41 {offsets = [72, 0], sizes = [8, 128], strides = [1, 1]} : vector<128x128xf32> to vector<8x128xf32>
      %52 = vector.extract_strided_slice %41 {offsets = [80, 0], sizes = [8, 128], strides = [1, 1]} : vector<128x128xf32> to vector<8x128xf32>
      %53 = vector.extract_strided_slice %41 {offsets = [88, 0], sizes = [8, 128], strides = [1, 1]} : vector<128x128xf32> to vector<8x128xf32>
      %54 = vector.extract_strided_slice %41 {offsets = [96, 0], sizes = [8, 128], strides = [1, 1]} : vector<128x128xf32> to vector<8x128xf32>
      %55 = vector.extract_strided_slice %41 {offsets = [104, 0], sizes = [8, 128], strides = [1, 1]} : vector<128x128xf32> to vector<8x128xf32>
      %56 = vector.extract_strided_slice %41 {offsets = [112, 0], sizes = [8, 128], strides = [1, 1]} : vector<128x128xf32> to vector<8x128xf32>
      %57 = vector.extract_strided_slice %41 {offsets = [120, 0], sizes = [8, 128], strides = [1, 1]} : vector<128x128xf32> to vector<8x128xf32>
      %58 = arith.addf %42, %43 : vector<8x128xf32>
      %59 = arith.addf %44, %45 : vector<8x128xf32>
      %60 = arith.addf %46, %47 : vector<8x128xf32>
      %61 = arith.addf %48, %49 : vector<8x128xf32>
      %62 = arith.addf %50, %51 : vector<8x128xf32>
      %63 = arith.addf %52, %53 : vector<8x128xf32>
      %64 = arith.addf %54, %55 : vector<8x128xf32>
      %65 = arith.addf %56, %57 : vector<8x128xf32>
      %66 = arith.addf %58, %59 : vector<8x128xf32>
      %67 = arith.addf %60, %61 : vector<8x128xf32>
      %68 = arith.addf %62, %63 : vector<8x128xf32>
      %69 = arith.addf %64, %65 : vector<8x128xf32>
      %70 = arith.addf %66, %67 : vector<8x128xf32>
      %71 = arith.addf %68, %69 : vector<8x128xf32>
      %72 = arith.addf %70, %71 : vector<8x128xf32>
      %73 = vector.shape_cast %72 : vector<8x128xf32> to vector<1x8x128xf32>
      %c0_20 = arith.constant 0 : index
      %c0_21 = arith.constant 0 : index
      %c0_22 = arith.constant 0 : index
      %74 = vector.load %arg13[%c0_20, %c0_21, %c0_22] : memref<1x8x128xf32, #tpu.memory_space<vmem>>, vector<1x8x128xf32>
      %75 = arith.addf %74, %73 : vector<1x8x128xf32>
      %c0_23 = arith.constant 0 : index
      %c0_24 = arith.constant 0 : index
      %c0_25 = arith.constant 0 : index
      %76 = vector.load %arg13[%c0_23, %c0_24, %c0_25] : memref<1x8x128xf32, #tpu.memory_space<vmem>>, vector<1x8x128xf32>
      tpu.vector_store %arg13[%c0_23, %c0_24, %c0_25], %75 {strides = array<i32>} : memref<1x8x128xf32, #tpu.memory_space<vmem>>, vector<1x8x128xf32>,
    } else {
    }
    return
  }
  func.func @transform_0(%arg0: i32, %arg1: i32, %arg2: memref<1xi32, #tpu.memory_space<smem>>, %arg3: memref<1xi32, #tpu.memory_space<smem>>, %arg4: memref<1xi32, #tpu.memory_space<smem>>) -> (i32, i32) {
    %c1_i32 = arith.constant 1 : i32
    %0 = arith.muli %arg0, %c1_i32 : i32
    %1 = arith.addi %0, %arg1 : i32
    %2 = arith.index_cast %1 : i32 to index
    %3 = memref.load %arg2[%2] : memref<1xi32, #tpu.memory_space<smem>>
    %c0_i32 = arith.constant 0 : i32
    %c0_i32_0 = arith.constant 0 : i32
    return %3, %c0_i32 : i32, i32
  }
  func.func @transform_1(%arg0: i32, %arg1: i32, %arg2: memref<1xi32, #tpu.memory_space<smem>>, %arg3: memref<1xi32, #tpu.memory_space<smem>>, %arg4: memref<1xi32, #tpu.memory_space<smem>>) -> (i32, i32) {
    %c1_i32 = arith.constant 1 : i32
    %0 = arith.muli %arg0, %c1_i32 : i32
    %1 = arith.addi %0, %arg1 : i32
    %2 = arith.index_cast %1 : i32 to index
    %3 = memref.load %arg3[%2] : memref<1xi32, #tpu.memory_space<smem>>
    %c0_i32 = arith.constant 0 : i32
    %c0_i32_0 = arith.constant 0 : i32
    return %3, %c0_i32 : i32, i32
  }
  func.func @transform_2(%arg0: i32, %arg1: i32, %arg2: memref<1xi32, #tpu.memory_space<smem>>, %arg3: memref<1xi32, #tpu.memory_space<smem>>, %arg4: memref<1xi32, #tpu.memory_space<smem>>) -> (i32, i32) {
    %c1_i32 = arith.constant 1 : i32
    %0 = arith.muli %arg0, %c1_i32 : i32
    %1 = arith.addi %0, %arg1 : i32
    %2 = arith.index_cast %1 : i32 to index
    %3 = memref.load %arg2[%2] : memref<1xi32, #tpu.memory_space<smem>>
    %c0_i32 = arith.constant 0 : i32
    %c0_i32_0 = arith.constant 0 : i32
    return %3, %c0_i32 : i32, i32
  }
  func.func @transform_3(%arg0: i32, %arg1: i32, %arg2: memref<1xi32, #tpu.memory_space<smem>>, %arg3: memref<1xi32, #tpu.memory_space<smem>>, %arg4: memref<1xi32, #tpu.memory_space<smem>>) -> (i32, i32) {
    %c1_i32 = arith.constant 1 : i32
    %0 = arith.muli %arg0, %c1_i32 : i32
    %1 = arith.addi %0, %arg1 : i32
    %2 = arith.index_cast %1 : i32 to index
    %3 = memref.load %arg3[%2] : memref<1xi32, #tpu.memory_space<smem>>
    %c0_i32 = arith.constant 0 : i32
    %c0_i32_0 = arith.constant 0 : i32
    return %c0_i32, %3 : i32, i32
  }
  func.func @transform_4(%arg0: i32, %arg1: i32, %arg2: memref<1xi32, #tpu.memory_space<smem>>, %arg3: memref<1xi32, #tpu.memory_space<smem>>, %arg4: memref<1xi32, #tpu.memory_space<smem>>) -> (i32, i32) {
    %c1_i32 = arith.constant 1 : i32
    %0 = arith.muli %arg0, %c1_i32 : i32
    %1 = arith.addi %0, %arg1 : i32
    %2 = arith.index_cast %1 : i32 to index
    %3 = memref.load %arg2[%2] : memref<1xi32, #tpu.memory_space<smem>>
    %c0_i32 = arith.constant 0 : i32
    %c0_i32_0 = arith.constant 0 : i32
    return %3, %c0_i32 : i32, i32
  }
  func.func @transform_5(%arg0: i32, %arg1: i32, %arg2: memref<1xi32, #tpu.memory_space<smem>>, %arg3: memref<1xi32, #tpu.memory_space<smem>>, %arg4: memref<1xi32, #tpu.memory_space<smem>>) -> (i32, i32) {
    %c1_i32 = arith.constant 1 : i32
    %0 = arith.muli %arg0, %c1_i32 : i32
    %1 = arith.addi %0, %arg1 : i32
    %2 = arith.index_cast %1 : i32 to index
    %3 = memref.load %arg3[%2] : memref<1xi32, #tpu.memory_space<smem>>
    %c0_i32 = arith.constant 0 : i32
    %c0_i32_0 = arith.constant 0 : i32
    return %c0_i32, %3 : i32, i32
  }
  func.func @transform_6(%arg0: i32, %arg1: i32, %arg2: memref<1xi32, #tpu.memory_space<smem>>, %arg3: memref<1xi32, #tpu.memory_space<smem>>, %arg4: memref<1xi32, #tpu.memory_space<smem>>) -> (i32, i32) {
    %c1_i32 = arith.constant 1 : i32
    %0 = arith.muli %arg0, %c1_i32 : i32
    %1 = arith.addi %0, %arg1 : i32
    %2 = arith.index_cast %1 : i32 to index
    %3 = memref.load %arg2[%2] : memref<1xi32, #tpu.memory_space<smem>>
    %c0_i32 = arith.constant 0 : i32
    %c0_i32_0 = arith.constant 0 : i32
    return %3, %c0_i32 : i32, i32
  }
  func.func @transform_7(%arg0: i32, %arg1: i32, %arg2: memref<1xi32, #tpu.memory_space<smem>>, %arg3: memref<1xi32, #tpu.memory_space<smem>>, %arg4: memref<1xi32, #tpu.memory_space<smem>>) -> (i32, i32) {
    %c1_i32 = arith.constant 1 : i32
    %0 = arith.muli %arg0, %c1_i32 : i32
    %1 = arith.addi %0, %arg1 : i32
    %2 = arith.index_cast %1 : i32 to index
    %3 = memref.load %arg3[%2] : memref<1xi32, #tpu.memory_space<smem>>
    %c0_i32 = arith.constant 0 : i32
    %c0_i32_0 = arith.constant 0 : i32
    return %c0_i32, %3 : i32, i32
  }
  func.func @transform_8(%arg0: i32, %arg1: i32, %arg2: memref<1xi32, #tpu.memory_space<smem>>, %arg3: memref<1xi32, #tpu.memory_space<smem>>, %arg4: memref<1xi32, #tpu.memory_space<smem>>) -> (i32, i32, i32) {
    %c1_i32 = arith.constant 1 : i32
    %0 = arith.muli %arg0, %c1_i32 : i32
    %1 = arith.addi %0, %arg1 : i32
    %2 = arith.index_cast %1 : i32 to index
    %3 = memref.load %arg2[%2] : memref<1xi32, #tpu.memory_space<smem>>
    %c0_i32 = arith.constant 0 : i32
    %c0_i32_0 = arith.constant 0 : i32
    %c0_i32_1 = arith.constant 0 : i32
    return %3, %c0_i32, %c0_i32_0 : i32, i32, i32
  }
}

</mosaic_0001>

<llo_original>
// kernel: tpu_custom_call.1
$region0: #{tpu_custom_call.1}
  #allocation0 [shape = 'u32[]', space=smem, size = 0x4, offset = 0x4, fixed_abs, tag = 'smem constant byte address 0x4 - core index']
  #allocation1 [shape = 'u32[72,128]{1,0:T(1,128)}', space=vmem, size = 0x9000, scoped, tag = 'internal scratch']
  #allocation2 [shape = 's32[1]{0}', space=sflag, size = 0x4, scoped, tag = 'scoped memory for tpu_custom_call.1']
  #allocation3 [shape = 's32[1]{0:T(128)S(6)}', space=smem, size = 0x200, scoped, tag = 'prefetched SMEM operand 0']
  #allocation4 [shape = 's32[1]{0:T(128)S(6)}', space=smem, size = 0x200, scoped, tag = 'prefetched SMEM operand 1']
  #allocation5 [shape = 's32[1]{0:T(128)S(6)}', space=smem, size = 0x200, scoped, tag = 'prefetched SMEM operand 2']
  %s0 = inlined_call_operand.<no memory space> [shape: s32[1], index: 0, kind: input, shape index: {}]
  %s1 = inlined_call_operand.<no memory space> [shape: s32[1], index: 1, kind: input, shape index: {}]
  %s2 = inlined_call_operand.<no memory space> [shape: s32[1], index: 2, kind: input, shape index: {}]
  %s3 = inlined_call_operand.vmem [shape: bf16[128,32], index: 3, kind: input, shape index: {}]
  %s4 = inlined_call_operand.vmem [shape: bf16[128,32], index: 4, kind: input, shape index: {}]
  %s5 = inlined_call_operand.vmem [shape: f32[128,1], index: 5, kind: input, shape index: {}]
  %s6 = inlined_call_operand.vmem [shape: f32[1,128], index: 6, kind: input, shape index: {}]
  %s7 = inlined_call_operand.vmem [shape: s32[128,1], index: 7, kind: input, shape index: {}]
  %s8 = inlined_call_operand.vmem [shape: s32[1,128], index: 8, kind: input, shape index: {}]
  %s9 = inlined_call_operand.vmem [shape: s32[128,1], index: 9, kind: input, shape index: {}]
  %s10 = inlined_call_operand.vmem [shape: s32[1,128], index: 10, kind: input, shape index: {}]
  %s11 = inlined_call_operand.hbm [shape: f32[1,8,128], index: 11, kind: output, shape index: {}]
  %s12 = sld [smem:[#allocation0]]
  $region50: #{tpu_custom_call.1} parent=0
    _
  %s14 = ssub.s32 1, %s12
  %s15 = scalar_select 0, %s14, %s12
  %16 = sst [smem:[#allocation3]] %s0
  %17 = sst [smem:[#allocation4]] %s1
  %18 = sst [smem:[#allocation5]] %s2
  $region1: #{tpu_custom_call.1} parent=0
    #allocation6 [shape = 'u8[4096]{0}', space=vmem, size = 0x1000, scoped, tag = 'output window, operand 0, single buffered']
    #allocation7 [shape = 's32[1]{0}', space=sflag, size = 0x4, scoped, tag = 'scoped memory for tpu_custom_call.1']
    %19 = vsyncpa [#allocation7], 0
    // Predicated region
    $region2: #{tpu_custom_call.1} parent=1 // pred_check
      _
    $region3: #{tpu_custom_call.1} parent=1 // pred_check_branch
      %21 = sbr.rel (0) target = $region5
    $region4: #{tpu_custom_call.1} parent=1 // pred_region
      %s22 = sadd.s32 0, 0
      %s23 = sld [smem:[#allocation3 + %s22]]
      %s24 = smul.u32 16, %s23
      %p25 = scmp.lt.s32.totalorder %s24, 15
      %s26 = scalar_select %p25, %s24, 15
      %s27 = smul.addr %s26, 4
      %s28 = scalar_lea.vmem %s3, %s27
      %s29 = sadd.s32 0, 0
      %s30 = sld [smem:[#allocation3 + %s29]]
      %s31 = smul.u32 16, %s30
    $region5: #{tpu_custom_call.1} parent=1 // pred_fallthru
      _
    // Predicated region
    $region6: #{tpu_custom_call.1} parent=1 // pred_check
      _
    $region7: #{tpu_custom_call.1} parent=1 // pred_check_branch
      %33 = sbr.rel (0) target = $region9
    $region8: #{tpu_custom_call.1} parent=1 // pred_region
      %s34 = sadd.s32 0, 0
      %s35 = sld [smem:[#allocation4 + %s34]]
      %s36 = smul.u32 16, %s35
      %p37 = scmp.lt.s32.totalorder %s36, 15
      %s38 = scalar_select %p37, %s36, 15
      %s39 = smul.addr %s38, 4
      %s40 = scalar_lea.vmem %s4, %s39
      %s41 = sadd.s32 0, 0
      %s42 = sld [smem:[#allocation4 + %s41]]
      %s43 = smul.u32 16, %s42
    $region9: #{tpu_custom_call.1} parent=1 // pred_fallthru
      _
    // Predicated region
    $region10: #{tpu_custom_call.1} parent=1 // pred_check
      _
    $region11: #{tpu_custom_call.1} parent=1 // pred_check_branch
      %45 = sbr.rel (0) target = $region13
    $region12: #{tpu_custom_call.1} parent=1 // pred_region
      %s46 = sadd.s32 0, 0
      %s47 = sld [smem:[#allocation3 + %s46]]
      %s48 = smul.u32 16, %s47
      %p49 = scmp.lt.s32.totalorder %s48, 15
      %s50 = scalar_select %p49, %s48, 15
      %s51 = smul.addr %s50, 8
      %s52 = scalar_lea.vmem %s5, %s51
      %s53 = sadd.s32 0, 0
      %s54 = sld [smem:[#allocation3 + %s53]]
      %s55 = smul.u32 16, %s54
    $region13: #{tpu_custom_call.1} parent=1 // pred_fallthru
      _
    // Predicated region
    $region14: #{tpu_custom_call.1} parent=1 // pred_check
      _
    $region15: #{tpu_custom_call.1} parent=1 // pred_check_branch
      %57 = sbr.rel (0) target = $region17
    $region16: #{tpu_custom_call.1} parent=1 // pred_region
      %s58 = sadd.s32 0, 0
      %s59 = sld [smem:[#allocation4 + %s58]]
      %p60 = scmp.lt.s32.totalorder %s59, 0
      %s61 = scalar_select %p60, %s59, 0
      %s62 = scalar_lea.vmem %s6, %s61
      %s63 = sadd.s32 0, 0
      %s64 = sld [smem:[#allocation4 + %s63]]
    $region17: #{tpu_custom_call.1} parent=1 // pred_fallthru
      _
    // Predicated region
    $region18: #{tpu_custom_call.1} parent=1 // pred_check
      _
    $region19: #{tpu_custom_call.1} parent=1 // pred_check_branch
      %66 = sbr.rel (0) target = $region21
    $region20: #{tpu_custom_call.1} parent=1 // pred_region
      %s67 = sadd.s32 0, 0
      %s68 = sld [smem:[#allocation3 + %s67]]
      %s69 = smul.u32 16, %s68
      %p70 = scmp.lt.s32.totalorder %s69, 15
      %s71 = scalar_select %p70, %s69, 15
      %s72 = smul.addr %s71, 8
      %s73 = scalar_lea.vmem %s7, %s72
      %s74 = sadd.s32 0, 0
      %s75 = sld [smem:[#allocation3 + %s74]]
      %s76 = smul.u32 16, %s75
    $region21: #{tpu_custom_call.1} parent=1 // pred_fallthru
      _
    // Predicated region
    $region22: #{tpu_custom_call.1} parent=1 // pred_check
      _
    $region23: #{tpu_custom_call.1} parent=1 // pred_check_branch
      %78 = sbr.rel (0) target = $region25
    $region24: #{tpu_custom_call.1} parent=1 // pred_region
      %s79 = sadd.s32 0, 0
      %s80 = sld [smem:[#allocation4 + %s79]]
      %p81 = scmp.lt.s32.totalorder %s80, 0
      %s82 = scalar_select %p81, %s80, 0
      %s83 = scalar_lea.vmem %s8, %s82
      %s84 = sadd.s32 0, 0
      %s85 = sld [smem:[#allocation4 + %s84]]
    $region25: #{tpu_custom_call.1} parent=1 // pred_fallthru
      _
    // Predicated region
    $region26: #{tpu_custom_call.1} parent=1 // pred_check
      _
    $region27: #{tpu_custom_call.1} parent=1 // pred_check_branch
      %87 = sbr.rel (0) target = $region29
    $region28: #{tpu_custom_call.1} parent=1 // pred_region
      %s88 = sadd.s32 0, 0
      %s89 = sld [smem:[#allocation3 + %s88]]
      %s90 = smul.u32 16, %s89
      %p91 = scmp.lt.s32.totalorder %s90, 15
      %s92 = scalar_select %p91, %s90, 15
      %s93 = smul.addr %s92, 8
      %s94 = scalar_lea.vmem %s9, %s93
      %s95 = sadd.s32 0, 0
      %s96 = sld [smem:[#allocation3 + %s95]]
      %s97 = smul.u32 16, %s96
    $region29: #{tpu_custom_call.1} parent=1 // pred_fallthru
      _
    // Predicated region
    $region30: #{tpu_custom_call.1} parent=1 // pred_check
      _
    $region31: #{tpu_custom_call.1} parent=1 // pred_check_branch
      %99 = sbr.rel (0) target = $region33
    $region32: #{tpu_custom_call.1} parent=1 // pred_region
      %s100 = sadd.s32 0, 0
      %s101 = sld [smem:[#allocation4 + %s100]]
      %p102 = scmp.lt.s32.totalorder %s101, 0
      %s103 = scalar_select %p102, %s101, 0
      %s104 = scalar_lea.vmem %s10, %s103
      %s105 = sadd.s32 0, 0
      %s106 = sld [smem:[#allocation4 + %s105]]
    $region33: #{tpu_custom_call.1} parent=1 // pred_fallthru
      _
    %s107 = sadd.s32 0, 0
    %s108 = sld [smem:[#allocation3 + %s107]]
    %s109 = smul.u32 16, %s108
    %p110 = scmp.lt.s32.totalorder %s109, 15
    %s111 = scalar_select %p110, %s109, 15
    %s112 = smul.addr %s111, 4
    %s113 = scalar_lea.vmem %s3, %s112
    %s114 = sadd.s32 0, 0
    %s115 = sld [smem:[#allocation4 + %s114]]
    %s116 = smul.u32 16, %s115
    %p117 = scmp.lt.s32.totalorder %s116, 15
    %s118 = scalar_select %p117, %s116, 15
    %s119 = smul.addr %s118, 4
    %s120 = scalar_lea.vmem %s4, %s119
    %s121 = sadd.s32 0, 0
    %s122 = sld [smem:[#allocation3 + %s121]]
    %s123 = smul.u32 16, %s122
    %p124 = scmp.lt.s32.totalorder %s123, 15
    %s125 = scalar_select %p124, %s123, 15
    %s126 = smul.addr %s125, 8
    %s127 = scalar_lea.vmem %s5, %s126
    %s128 = sadd.s32 0, 0
    %s129 = sld [smem:[#allocation4 + %s128]]
    %p130 = scmp.lt.s32.totalorder %s129, 0
    %s131 = scalar_select %p130, %s129, 0
    %s132 = scalar_lea.vmem %s6, %s131
    %s133 = sadd.s32 0, 0
    %s134 = sld [smem:[#allocation3 + %s133]]
    %s135 = smul.u32 16, %s134
    %p136 = scmp.lt.s32.totalorder %s135, 15
    %s137 = scalar_select %p136, %s135, 15
    %s138 = smul.addr %s137, 8
    %s139 = scalar_lea.vmem %s7, %s138
    %s140 = sadd.s32 0, 0
    %s141 = sld [smem:[#allocation4 + %s140]]
    %p142 = scmp.lt.s32.totalorder %s141, 0
    %s143 = scalar_select %p142, %s141, 0
    %s144 = scalar_lea.vmem %s8, %s143
    %s145 = sadd.s32 0, 0
    %s146 = sld [smem:[#allocation3 + %s145]]
    %s147 = smul.u32 16, %s146
    %p148 = scmp.lt.s32.totalorder %s147, 15
    %s149 = scalar_select %p148, %s147, 15
    %s150 = smul.addr %s149, 8
    %s151 = scalar_lea.vmem %s9, %s150
    %s152 = sadd.s32 0, 0
    %s153 = sld [smem:[#allocation4 + %s152]]
    %p154 = scmp.lt.s32.totalorder %s153, 0
    %s155 = scalar_select %p154, %s153, 0
    %s156 = scalar_lea.vmem %s10, %s155
    %s157 = sadd.s32 0, 0
    %s158 = sld [smem:[#allocation3 + %s157]]
    %s159 = smul.u32 16, %s158
    %p160 = scmp.lt.s32.totalorder %s159, 15
    %s161 = scalar_select %p160, %s159, 15
    %s162 = smul.addr %s161, 4
    %s163 = scalar_lea.vmem %s3, %s162
    %s164 = sadd.s32 0, 0
    %s165 = sld [smem:[#allocation3 + %s164]]
    %s166 = smul.u32 16, %s165
    %s167 = sadd.s32 0, 0
    %s168 = sld [smem:[#allocation4 + %s167]]
    %s169 = smul.u32 16, %s168
    %p170 = scmp.lt.s32.totalorder %s169, 15
    %s171 = scalar_select %p170, %s169, 15
    %s172 = smul.addr %s171, 4
    %s173 = scalar_lea.vmem %s4, %s172
    %s174 = sadd.s32 0, 0
    %s175 = sld [smem:[#allocation4 + %s174]]
    %s176 = smul.u32 16, %s175
    %s177 = sadd.s32 0, 0
    %s178 = sld [smem:[#allocation3 + %s177]]
    %s179 = smul.u32 16, %s178
    %p180 = scmp.lt.s32.totalorder %s179, 15
    %s181 = scalar_select %p180, %s179, 15
    %s182 = smul.addr %s181, 8
    %s183 = scalar_lea.vmem %s5, %s182
    %s184 = sadd.s32 0, 0
    %s185 = sld [smem:[#allocation3 + %s184]]
    %s186 = smul.u32 16, %s185
    %s187 = sadd.s32 0, 0
    %s188 = sld [smem:[#allocation4 + %s187]]
    %p189 = scmp.lt.s32.totalorder %s188, 0
    %s190 = scalar_select %p189, %s188, 0
    %s191 = scalar_lea.vmem %s6, %s190
    %s192 = sadd.s32 0, 0
    %s193 = sld [smem:[#allocation4 + %s192]]
    %s194 = sadd.s32 0, 0
    %s195 = sld [smem:[#allocation3 + %s194]]
    %s196 = smul.u32 16, %s195
    %p197 = scmp.lt.s32.totalorder %s196, 15
    %s198 = scalar_select %p197, %s196, 15
    %s199 = smul.addr %s198, 8
    %s200 = scalar_lea.vmem %s7, %s199
    %s201 = sadd.s32 0, 0
    %s202 = sld [smem:[#allocation3 + %s201]]
    %s203 = smul.u32 16, %s202
    %s204 = sadd.s32 0, 0
    %s205 = sld [smem:[#allocation4 + %s204]]
    %p206 = scmp.lt.s32.totalorder %s205, 0
    %s207 = scalar_select %p206, %s205, 0
    %s208 = scalar_lea.vmem %s8, %s207
    %s209 = sadd.s32 0, 0
    %s210 = sld [smem:[#allocation4 + %s209]]
    %s211 = sadd.s32 0, 0
    %s212 = sld [smem:[#allocation3 + %s211]]
    %s213 = smul.u32 16, %s212
    %p214 = scmp.lt.s32.totalorder %s213, 15
    %s215 = scalar_select %p214, %s213, 15
    %s216 = smul.addr %s215, 8
    %s217 = scalar_lea.vmem %s9, %s216
    %s218 = sadd.s32 0, 0
    %s219 = sld [smem:[#allocation3 + %s218]]
    %s220 = smul.u32 16, %s219
    %s221 = sadd.s32 0, 0
    %s222 = sld [smem:[#allocation4 + %s221]]
    %p223 = scmp.lt.s32.totalorder %s222, 0
    %s224 = scalar_select %p223, %s222, 0
    %s225 = scalar_lea.vmem %s10, %s224
    %s226 = sadd.s32 0, 0
    %s227 = sld [smem:[#allocation4 + %s226]]
    %s228 = sadd.s32 0, 0
    %s229 = sld [smem:[#allocation3 + %s228]]
    %s230 = sadd.s32 0, 0
    %s231 = sld [smem:[#allocation5 + %s230]]
    %p232 = scmp.eq.s32.totalorder %s231, 2
    // Predicated region
    $region34: #{tpu_custom_call.1} parent=1 // pred_check
      %p233 = pneg %p232
    $region35: #{tpu_custom_call.1} parent=1 // pred_check_branch
      %235 = sbr.rel (%p233) target = $region37
    $region36: #{tpu_custom_call.1} parent=1 // pred_region
      %v236 = vld [vmem:[%s163] sm:$0xf]
      %v237 = vld [vmem:[%s163 + $0x4] sm:$0xf]
      %v238 = vld [vmem:[%s163 + $0x8] sm:$0xf]
      %v239 = vld [vmem:[%s163 + $0xc] sm:$0xf]
      %v240 = vld [vmem:[%s163 + $0x10] sm:$0xf]
      %v241 = vld [vmem:[%s163 + $0x14] sm:$0xf]
      %v242 = vld [vmem:[%s163 + $0x18] sm:$0xf]
      %v243 = vld [vmem:[%s163 + $0x1c] sm:$0xf]
      %v244 = vld [vmem:[%s163 + $0x20] sm:$0xf]
      %v245 = vld [vmem:[%s163 + $0x24] sm:$0xf]
      %v246 = vld [vmem:[%s163 + $0x28] sm:$0xf]
      %v247 = vld [vmem:[%s163 + $0x2c] sm:$0xf]
      %v248 = vld [vmem:[%s163 + $0x30] sm:$0xf]
      %v249 = vld [vmem:[%s163 + $0x34] sm:$0xf]
      %v250 = vld [vmem:[%s163 + $0x38] sm:$0xf]
      %v251 = vld [vmem:[%s163 + $0x3c] sm:$0xf]
      %v252 = vld [vmem:[%s173] sm:$0xf]
      %v253 = vld [vmem:[%s173 + $0x4] sm:$0xf]
      %v254 = vld [vmem:[%s173 + $0x8] sm:$0xf]
      %v255 = vld [vmem:[%s173 + $0xc] sm:$0xf]
      %v256 = vld [vmem:[%s173 + $0x10] sm:$0xf]
      %v257 = vld [vmem:[%s173 + $0x14] sm:$0xf]
      %v258 = vld [vmem:[%s173 + $0x18] sm:$0xf]
      %v259 = vld [vmem:[%s173 + $0x1c] sm:$0xf]
      %v260 = vld [vmem:[%s173 + $0x20] sm:$0xf]
      %v261 = vld [vmem:[%s173 + $0x24] sm:$0xf]
      %v262 = vld [vmem:[%s173 + $0x28] sm:$0xf]
      %v263 = vld [vmem:[%s173 + $0x2c] sm:$0xf]
      %v264 = vld [vmem:[%s173 + $0x30] sm:$0xf]
      %v265 = vld [vmem:[%s173 + $0x34] sm:$0xf]
      %v266 = vld [vmem:[%s173 + $0x38] sm:$0xf]
      %v267 = vld [vmem:[%s173 + $0x3c] sm:$0xf]
      %v284 = vunpack.c.l.b16 %v236
      %v285 = vunpack.c.l.b16 %v237
      %v286 = vunpack.c.l.b16 %v238
      %v287 = vunpack.c.l.b16 %v239
      %v288 = vunpack.c.l.b16 %v240
      %v289 = vunpack.c.l.b16 %v241
      %v290 = vunpack.c.l.b16 %v242
      %v291 = vunpack.c.l.b16 %v243
      %v292 = vunpack.c.l.b16 %v244
      %v293 = vunpack.c.l.b16 %v245
      %v294 = vunpack.c.l.b16 %v246
      %v295 = vunpack.c.l.b16 %v247
      %v296 = vunpack.c.l.b16 %v248
      %v297 = vunpack.c.l.b16 %v249
      %v298 = vunpack.c.l.b16 %v250
      %v299 = vunpack.c.l.b16 %v251
      %v300 = vpack.c.b16 %v285, %v284
      %v301 = vpack.c.b16 %v287, %v286
      %v302 = vpack.c.b16 %v289, %v288
      %v303 = vpack.c.b16 %v291, %v290
      %v304 = vpack.c.b16 %v293, %v292
      %v305 = vpack.c.b16 %v295, %v294
      %v306 = vpack.c.b16 %v297, %v296
      %v307 = vpack.c.b16 %v299, %v298
      %v324 = vunpack.c.l.b16 %v252
      %v325 = vunpack.c.l.b16 %v253
      %v326 = vunpack.c.l.b16 %v254
      %v327 = vunpack.c.l.b16 %v255
      %v328 = vunpack.c.l.b16 %v256
      %v329 = vunpack.c.l.b16 %v257
      %v330 = vunpack.c.l.b16 %v258
      %v331 = vunpack.c.l.b16 %v259
      %v332 = vunpack.c.l.b16 %v260
      %v333 = vunpack.c.l.b16 %v261
      %v334 = vunpack.c.l.b16 %v262
      %v335 = vunpack.c.l.b16 %v263
      %v336 = vunpack.c.l.b16 %v264
      %v337 = vunpack.c.l.b16 %v265
      %v338 = vunpack.c.l.b16 %v266
      %v339 = vunpack.c.l.b16 %v267
      %v340 = vpack.c.b16 %v325, %v324
      %v341 = vpack.c.b16 %v327, %v326
      %v342 = vpack.c.b16 %v329, %v328
      %v343 = vpack.c.b16 %v331, %v330
      %v344 = vpack.c.b16 %v333, %v332
      %v345 = vpack.c.b16 %v335, %v334
      %v346 = vpack.c.b16 %v337, %v336
      %v347 = vpack.c.b16 %v339, %v338
      %vm348 = vcmask 261120
      %v350 = vsel %vm348, %v300, 0
      %v353 = vsel %vm348, %v301, 0
      %v356 = vsel %vm348, %v302, 0
      %v359 = vsel %vm348, %v303, 0
      %v362 = vsel %vm348, %v304, 0
      %v365 = vsel %vm348, %v305, 0
      %v368 = vsel %vm348, %v306, 0
      %v371 = vsel %vm348, %v307, 0
      %v374 = vsel %vm348, %v340, 0
      %v377 = vsel %vm348, %v341, 0
      %v380 = vsel %vm348, %v342, 0
      %v383 = vsel %vm348, %v343, 0
      %v386 = vsel %vm348, %v344, 0
      %v389 = vsel %vm348, %v345, 0
      %v392 = vsel %vm348, %v346, 0
      %v395 = vsel %vm348, %v347, 0
      %397 = vmatpush.bf16.xpose.msra.mxu0 %v395
      %398 = vmatpush.bf16.xpose.msra.mxu0 %v392
      %399 = vmatpush.bf16.xpose.msra.mxu0 %v389
      %400 = vmatpush.bf16.xpose.msra.mxu0 %v386
      %401 = vmatpush.bf16.xpose.msra.mxu0 %v383
      %402 = vmatpush.bf16.xpose.msra.mxu0 %v380
      %403 = vmatpush.bf16.xpose.msra.mxu0 %v377
      %404 = vmatpush.bf16.xpose.msra.mxu0 %v374
      %405 = vmatmul.bf16.gmra.mxu0 %v350
      %v406 = vpop.f32.mrf.mxu0
      %v407 = vadd.f32 0.0, %v406
      %v408 = vpop.f32.mrf.mxu0
      %v409 = vadd.f32 0.0, %v408
      %410 = vmatmul.bf16.gmra.mxu0 %v353
      %v411 = vpop.f32.mrf.mxu0
      %v412 = vadd.f32 0.0, %v411
      %v413 = vpop.f32.mrf.mxu0
      %v414 = vadd.f32 0.0, %v413
      %415 = vmatmul.bf16.gmra.mxu0 %v356
      %v416 = vpop.f32.mrf.mxu0
      %v417 = vadd.f32 0.0, %v416
      %v418 = vpop.f32.mrf.mxu0
      %v419 = vadd.f32 0.0, %v418
      %420 = vmatmul.bf16.gmra.mxu0 %v359
      %v421 = vpop.f32.mrf.mxu0
      %v422 = vadd.f32 0.0, %v421
      %v423 = vpop.f32.mrf.mxu0
      %v424 = vadd.f32 0.0, %v423
      %425 = vmatmul.bf16.gmra.mxu0 %v362
      %v426 = vpop.f32.mrf.mxu0
      %v427 = vadd.f32 0.0, %v426
      %v428 = vpop.f32.mrf.mxu0
      %v429 = vadd.f32 0.0, %v428
      %430 = vmatmul.bf16.gmra.mxu0 %v365
      %v431 = vpop.f32.mrf.mxu0
      %v432 = vadd.f32 0.0, %v431
      %v433 = vpop.f32.mrf.mxu0
      %v434 = vadd.f32 0.0, %v433
      %435 = vmatmul.bf16.gmra.mxu0 %v368
      %v436 = vpop.f32.mrf.mxu0
      %v437 = vadd.f32 0.0, %v436
      %v438 = vpop.f32.mrf.mxu0
      %v439 = vadd.f32 0.0, %v438
      %440 = vmatmul.bf16.gmra.mxu0 %v371
      %v441 = vpop.f32.mrf.mxu0
      %v442 = vadd.f32 0.0, %v441
      %v443 = vpop.f32.mrf.mxu0
      %v444 = vadd.f32 0.0, %v443
      %445 = vdwg.mxu0
      %v446 = vld [vmem:[%s183] sm:$0xff]
      %v447 = vld [vmem:[%s183 + $0x8] sm:$0xff]
      %v448 = vld [vmem:[%s183 + $0x10] sm:$0xff]
      %v449 = vld [vmem:[%s183 + $0x18] sm:$0xff]
      %v450 = vld [vmem:[%s183 + $0x20] sm:$0xff]
      %v451 = vld [vmem:[%s183 + $0x28] sm:$0xff]
      %v452 = vld [vmem:[%s183 + $0x30] sm:$0xff]
      %v453 = vld [vmem:[%s183 + $0x38] sm:$0xff]
      %v454 = vld [vmem:[%s183 + $0x40] sm:$0xff]
      %v455 = vld [vmem:[%s183 + $0x48] sm:$0xff]
      %v456 = vld [vmem:[%s183 + $0x50] sm:$0xff]
      %v457 = vld [vmem:[%s183 + $0x58] sm:$0xff]
      %v458 = vld [vmem:[%s183 + $0x60] sm:$0xff]
      %v459 = vld [vmem:[%s183 + $0x68] sm:$0xff]
      %v460 = vld [vmem:[%s183 + $0x70] sm:$0xff]
      %v461 = vld [vmem:[%s183 + $0x78] sm:$0xff]
      %v462 = vld [vmem:[%s191] sm:$0x1]
      %464 = vset.pattern.permute.xlu0 0
      %465 = vperm.xlu0 %464, %v446
      %v466 = vpop.permute.xlu0 %465
      %469 = vset.pattern.permute.xlu0 0
      %470 = vperm.xlu0 %469, %v447
      %v471 = vpop.permute.xlu0 %470
      %474 = vset.pattern.permute.xlu0 0
      %475 = vperm.xlu0 %474, %v448
      %v476 = vpop.permute.xlu0 %475
      %479 = vset.pattern.permute.xlu0 0
      %480 = vperm.xlu0 %479, %v449
      %v481 = vpop.permute.xlu0 %480
      %484 = vset.pattern.permute.xlu0 0
      %485 = vperm.xlu0 %484, %v450
      %v486 = vpop.permute.xlu0 %485
      %489 = vset.pattern.permute.xlu0 0
      %490 = vperm.xlu0 %489, %v451
      %v491 = vpop.permute.xlu0 %490
      %494 = vset.pattern.permute.xlu0 0
      %495 = vperm.xlu0 %494, %v452
      %v496 = vpop.permute.xlu0 %495
      %499 = vset.pattern.permute.xlu0 0
      %500 = vperm.xlu0 %499, %v453
      %v501 = vpop.permute.xlu0 %500
      %504 = vset.pattern.permute.xlu0 0
      %505 = vperm.xlu0 %504, %v454
      %v506 = vpop.permute.xlu0 %505
      %509 = vset.pattern.permute.xlu0 0
      %510 = vperm.xlu0 %509, %v455
      %v511 = vpop.permute.xlu0 %510
      %514 = vset.pattern.permute.xlu0 0
      %515 = vperm.xlu0 %514, %v456
      %v516 = vpop.permute.xlu0 %515
      %519 = vset.pattern.permute.xlu0 0
      %520 = vperm.xlu0 %519, %v457
      %v521 = vpop.permute.xlu0 %520
      %524 = vset.pattern.permute.xlu0 0
      %525 = vperm.xlu0 %524, %v458
      %v526 = vpop.permute.xlu0 %525
      %529 = vset.pattern.permute.xlu0 0
      %530 = vperm.xlu0 %529, %v459
      %v531 = vpop.permute.xlu0 %530
      %534 = vset.pattern.permute.xlu0 0
      %535 = vperm.xlu0 %534, %v460
      %v536 = vpop.permute.xlu0 %535
      %539 = vset.pattern.permute.xlu0 0
      %540 = vperm.xlu0 %539, %v461
      %v541 = vpop.permute.xlu0 %540
      %v544 = vperm.slane %v462, 0
      %v546 = vadd.f32 %v466, %v544
      %v547 = vadd.f32 %v471, %v544
      %v548 = vadd.f32 %v476, %v544
      %v549 = vadd.f32 %v481, %v544
      %v550 = vadd.f32 %v486, %v544
      %v551 = vadd.f32 %v491, %v544
      %v552 = vadd.f32 %v496, %v544
      %v553 = vadd.f32 %v501, %v544
      %v554 = vadd.f32 %v506, %v544
      %v555 = vadd.f32 %v511, %v544
      %v556 = vadd.f32 %v516, %v544
      %v557 = vadd.f32 %v521, %v544
      %v558 = vadd.f32 %v526, %v544
      %v559 = vadd.f32 %v531, %v544
      %v560 = vadd.f32 %v536, %v544
      %v561 = vadd.f32 %v541, %v544
      %v562 = vmul.f32 %v407, 2.0
      %v563 = vmul.f32 %v409, 2.0
      %v564 = vmul.f32 %v412, 2.0
      %v565 = vmul.f32 %v414, 2.0
      %v566 = vmul.f32 %v417, 2.0
      %v567 = vmul.f32 %v419, 2.0
      %v568 = vmul.f32 %v422, 2.0
      %v569 = vmul.f32 %v424, 2.0
      %v570 = vmul.f32 %v427, 2.0
      %v571 = vmul.f32 %v429, 2.0
      %v572 = vmul.f32 %v432, 2.0
      %v573 = vmul.f32 %v434, 2.0
      %v574 = vmul.f32 %v437, 2.0
      %v575 = vmul.f32 %v439, 2.0
      %v576 = vmul.f32 %v442, 2.0
      %v577 = vmul.f32 %v444, 2.0
      %v578 = vsub.f32 %v546, %v562
      %v579 = vsub.f32 %v547, %v563
      %v580 = vsub.f32 %v548, %v564
      %v581 = vsub.f32 %v549, %v565
      %v582 = vsub.f32 %v550, %v566
      %v583 = vsub.f32 %v551, %v567
      %v584 = vsub.f32 %v552, %v568
      %v585 = vsub.f32 %v553, %v569
      %v586 = vsub.f32 %v554, %v570
      %v587 = vsub.f32 %v555, %v571
      %v588 = vsub.f32 %v556, %v572
      %v589 = vsub.f32 %v557, %v573
      %v590 = vsub.f32 %v558, %v574
      %v591 = vsub.f32 %v559, %v575
      %v592 = vsub.f32 %v560, %v576
      %v593 = vsub.f32 %v561, %v577
      %v594 = vmax.f32 %v578, 1e-12
      %v595 = vmax.f32 %v579, 1e-12
      %v596 = vmax.f32 %v580, 1e-12
      %v597 = vmax.f32 %v581, 1e-12
      %v598 = vmax.f32 %v582, 1e-12
      %v599 = vmax.f32 %v583, 1e-12
      %v600 = vmax.f32 %v584, 1e-12
      %v601 = vmax.f32 %v585, 1e-12
      %v602 = vmax.f32 %v586, 1e-12
      %v603 = vmax.f32 %v587, 1e-12
      %v604 = vmax.f32 %v588, 1e-12
      %v605 = vmax.f32 %v589, 1e-12
      %v606 = vmax.f32 %v590, 1e-12
      %v607 = vmax.f32 %v591, 1e-12
      %v608 = vmax.f32 %v592, 1e-12
      %v609 = vmax.f32 %v593, 1e-12
      %v610 = vrsqrt.pop %v594
      %v611 = vmul.f32 %v610, %v594
      %v612 = vmul.f32 %v611, %v610
      %v613 = vmul.f32 0.5, %v612
      %v614 = vsub.f32 1.5, %v613
      %v615 = vmul.f32 %v610, %v614
      %v616 = vmul.f32 %v594, %v615
      %vm617 = vcmp.eq.f32.partialorder %v594, inf
      %v618 = vsel %vm617, %v594, %v616
      %vm619 = vcmp.eq.f32.partialorder %v594, 0.0
      %v620 = vand.u32 %v594, 2147483648
      %v621 = vsel %vm619, %v620, %v618
      %v622 = vrsqrt.pop %v595
      %v623 = vmul.f32 %v622, %v595
      %v624 = vmul.f32 %v623, %v622
      %v625 = vmul.f32 0.5, %v624
      %v626 = vsub.f32 1.5, %v625
      %v627 = vmul.f32 %v622, %v626
      %v628 = vmul.f32 %v595, %v627
      %vm629 = vcmp.eq.f32.partialorder %v595, inf
      %v630 = vsel %vm629, %v595, %v628
      %vm631 = vcmp.eq.f32.partialorder %v595, 0.0
      %v632 = vand.u32 %v595, 2147483648
      %v633 = vsel %vm631, %v632, %v630
      %v634 = vrsqrt.pop %v596
      %v635 = vmul.f32 %v634, %v596
      %v636 = vmul.f32 %v635, %v634
      %v637 = vmul.f32 0.5, %v636
      %v638 = vsub.f32 1.5, %v637
      %v639 = vmul.f32 %v634, %v638
      %v640 = vmul.f32 %v596, %v639
      %vm641 = vcmp.eq.f32.partialorder %v596, inf
      %v642 = vsel %vm641, %v596, %v640
      %vm643 = vcmp.eq.f32.partialorder %v596, 0.0
      %v644 = vand.u32 %v596, 2147483648
      %v645 = vsel %vm643, %v644, %v642
      %v646 = vrsqrt.pop %v597
      %v647 = vmul.f32 %v646, %v597
      %v648 = vmul.f32 %v647, %v646
      %v649 = vmul.f32 0.5, %v648
      %v650 = vsub.f32 1.5, %v649
      %v651 = vmul.f32 %v646, %v650
      %v652 = vmul.f32 %v597, %v651
      %vm653 = vcmp.eq.f32.partialorder %v597, inf
      %v654 = vsel %vm653, %v597, %v652
      %vm655 = vcmp.eq.f32.partialorder %v597, 0.0
      %v656 = vand.u32 %v597, 2147483648
      %v657 = vsel %vm655, %v656, %v654
      %v658 = vrsqrt.pop %v598
      %v659 = vmul.f32 %v658, %v598
      %v660 = vmul.f32 %v659, %v658
      %v661 = vmul.f32 0.5, %v660
      %v662 = vsub.f32 1.5, %v661
      %v663 = vmul.f32 %v658, %v662
      %v664 = vmul.f32 %v598, %v663
      %vm665 = vcmp.eq.f32.partialorder %v598, inf
      %v666 = vsel %vm665, %v598, %v664
      %vm667 = vcmp.eq.f32.partialorder %v598, 0.0
      %v668 = vand.u32 %v598, 2147483648
      %v669 = vsel %vm667, %v668, %v666
      %v670 = vrsqrt.pop %v599
      %v671 = vmul.f32 %v670, %v599
      %v672 = vmul.f32 %v671, %v670
      %v673 = vmul.f32 0.5, %v672
      %v674 = vsub.f32 1.5, %v673
      %v675 = vmul.f32 %v670, %v674
      %v676 = vmul.f32 %v599, %v675
      %vm677 = vcmp.eq.f32.partialorder %v599, inf
      %v678 = vsel %vm677, %v599, %v676
      %vm679 = vcmp.eq.f32.partialorder %v599, 0.0
      %v680 = vand.u32 %v599, 2147483648
      %v681 = vsel %vm679, %v680, %v678
      %v682 = vrsqrt.pop %v600
      %v683 = vmul.f32 %v682, %v600
      %v684 = vmul.f32 %v683, %v682
      %v685 = vmul.f32 0.5, %v684
      %v686 = vsub.f32 1.5, %v685
      %v687 = vmul.f32 %v682, %v686
      %v688 = vmul.f32 %v600, %v687
      %vm689 = vcmp.eq.f32.partialorder %v600, inf
      %v690 = vsel %vm689, %v600, %v688
      %vm691 = vcmp.eq.f32.partialorder %v600, 0.0
      %v692 = vand.u32 %v600, 2147483648
      %v693 = vsel %vm691, %v692, %v690
      %v694 = vrsqrt.pop %v601
      %v695 = vmul.f32 %v694, %v601
      %v696 = vmul.f32 %v695, %v694
      %v697 = vmul.f32 0.5, %v696
      %v698 = vsub.f32 1.5, %v697
      %v699 = vmul.f32 %v694, %v698
      %v700 = vmul.f32 %v601, %v699
      %vm701 = vcmp.eq.f32.partialorder %v601, inf
      %v702 = vsel %vm701, %v601, %v700
      %vm703 = vcmp.eq.f32.partialorder %v601, 0.0
      %v704 = vand.u32 %v601, 2147483648
      %v705 = vsel %vm703, %v704, %v702
      %v706 = vrsqrt.pop %v602
      %v707 = vmul.f32 %v706, %v602
      %v708 = vmul.f32 %v707, %v706
      %v709 = vmul.f32 0.5, %v708
      %v710 = vsub.f32 1.5, %v709
      %v711 = vmul.f32 %v706, %v710
      %v712 = vmul.f32 %v602, %v711
      %vm713 = vcmp.eq.f32.partialorder %v602, inf
      %v714 = vsel %vm713, %v602, %v712
      %vm715 = vcmp.eq.f32.partialorder %v602, 0.0
      %v716 = vand.u32 %v602, 2147483648
      %v717 = vsel %vm715, %v716, %v714
      %v718 = vrsqrt.pop %v603
      %v719 = vmul.f32 %v718, %v603
      %v720 = vmul.f32 %v719, %v718
      %v721 = vmul.f32 0.5, %v720
      %v722 = vsub.f32 1.5, %v721
      %v723 = vmul.f32 %v718, %v722
      %v724 = vmul.f32 %v603, %v723
      %vm725 = vcmp.eq.f32.partialorder %v603, inf
      %v726 = vsel %vm725, %v603, %v724
      %vm727 = vcmp.eq.f32.partialorder %v603, 0.0
      %v728 = vand.u32 %v603, 2147483648
      %v729 = vsel %vm727, %v728, %v726
      %v730 = vrsqrt.pop %v604
      %v731 = vmul.f32 %v730, %v604
      %v732 = vmul.f32 %v731, %v730
      %v733 = vmul.f32 0.5, %v732
      %v734 = vsub.f32 1.5, %v733
      %v735 = vmul.f32 %v730, %v734
      %v736 = vmul.f32 %v604, %v735
      %vm737 = vcmp.eq.f32.partialorder %v604, inf
      %v738 = vsel %vm737, %v604, %v736
      %vm739 = vcmp.eq.f32.partialorder %v604, 0.0
      %v740 = vand.u32 %v604, 2147483648
      %v741 = vsel %vm739, %v740, %v738
      %v742 = vrsqrt.pop %v605
      %v743 = vmul.f32 %v742, %v605
      %v744 = vmul.f32 %v743, %v742
      %v745 = vmul.f32 0.5, %v744
      %v746 = vsub.f32 1.5, %v745
      %v747 = vmul.f32 %v742, %v746
      %v748 = vmul.f32 %v605, %v747
      %vm749 = vcmp.eq.f32.partialorder %v605, inf
      %v750 = vsel %vm749, %v605, %v748
      %vm751 = vcmp.eq.f32.partialorder %v605, 0.0
      %v752 = vand.u32 %v605, 2147483648
      %v753 = vsel %vm751, %v752, %v750
      %v754 = vrsqrt.pop %v606
      %v755 = vmul.f32 %v754, %v606
      %v756 = vmul.f32 %v755, %v754
      %v757 = vmul.f32 0.5, %v756
      %v758 = vsub.f32 1.5, %v757
      %v759 = vmul.f32 %v754, %v758
      %v760 = vmul.f32 %v606, %v759
      %vm761 = vcmp.eq.f32.partialorder %v606, inf
      %v762 = vsel %vm761, %v606, %v760
      %vm763 = vcmp.eq.f32.partialorder %v606, 0.0
      %v764 = vand.u32 %v606, 2147483648
      %v765 = vsel %vm763, %v764, %v762
      %v766 = vrsqrt.pop %v607
      %v767 = vmul.f32 %v766, %v607
      %v768 = vmul.f32 %v767, %v766
      %v769 = vmul.f32 0.5, %v768
      %v770 = vsub.f32 1.5, %v769
      %v771 = vmul.f32 %v766, %v770
      %v772 = vmul.f32 %v607, %v771
      %vm773 = vcmp.eq.f32.partialorder %v607, inf
      %v774 = vsel %vm773, %v607, %v772
      %vm775 = vcmp.eq.f32.partialorder %v607, 0.0
      %v776 = vand.u32 %v607, 2147483648
      %v777 = vsel %vm775, %v776, %v774
      %v778 = vrsqrt.pop %v608
      %v779 = vmul.f32 %v778, %v608
      %v780 = vmul.f32 %v779, %v778
      %v781 = vmul.f32 0.5, %v780
      %v782 = vsub.f32 1.5, %v781
      %v783 = vmul.f32 %v778, %v782
      %v784 = vmul.f32 %v608, %v783
      %vm785 = vcmp.eq.f32.partialorder %v608, inf
      %v786 = vsel %vm785, %v608, %v784
      %vm787 = vcmp.eq.f32.partialorder %v608, 0.0
      %v788 = vand.u32 %v608, 2147483648
      %v789 = vsel %vm787, %v788, %v786
      %v790 = vrsqrt.pop %v609
      %v791 = vmul.f32 %v790, %v609
      %v792 = vmul.f32 %v791, %v790
      %v793 = vmul.f32 0.5, %v792
      %v794 = vsub.f32 1.5, %v793
      %v795 = vmul.f32 %v790, %v794
      %v796 = vmul.f32 %v609, %v795
      %vm797 = vcmp.eq.f32.partialorder %v609, inf
      %v798 = vsel %vm797, %v609, %v796
      %vm799 = vcmp.eq.f32.partialorder %v609, 0.0
      %v800 = vand.u32 %v609, 2147483648
      %v801 = vsel %vm799, %v800, %v798
      %v802 = vld [vmem:[%s217] sm:$0xff]
      %v803 = vld [vmem:[%s217 + $0x8] sm:$0xff]
      %v804 = vld [vmem:[%s217 + $0x10] sm:$0xff]
      %v805 = vld [vmem:[%s217 + $0x18] sm:$0xff]
      %v806 = vld [vmem:[%s217 + $0x20] sm:$0xff]
      %v807 = vld [vmem:[%s217 + $0x28] sm:$0xff]
      %v808 = vld [vmem:[%s217 + $0x30] sm:$0xff]
      %v809 = vld [vmem:[%s217 + $0x38] sm:$0xff]
      %v810 = vld [vmem:[%s217 + $0x40] sm:$0xff]
      %v811 = vld [vmem:[%s217 + $0x48] sm:$0xff]
      %v812 = vld [vmem:[%s217 + $0x50] sm:$0xff]
      %v813 = vld [vmem:[%s217 + $0x58] sm:$0xff]
      %v814 = vld [vmem:[%s217 + $0x60] sm:$0xff]
      %v815 = vld [vmem:[%s217 + $0x68] sm:$0xff]
      %v816 = vld [vmem:[%s217 + $0x70] sm:$0xff]
      %v817 = vld [vmem:[%s217 + $0x78] sm:$0xff]
      %v818 = vld [vmem:[%s225] sm:$0x1]
      %819 = vset.pattern.permute.xlu0 0
      %820 = vperm.xlu0 %819, %v802
      %v821 = vpop.permute.xlu0 %820
      %822 = vset.pattern.permute.xlu0 0
      %823 = vperm.xlu0 %822, %v803
      %v824 = vpop.permute.xlu0 %823
      %825 = vset.pattern.permute.xlu0 0
      %826 = vperm.xlu0 %825, %v804
      %v827 = vpop.permute.xlu0 %826
      %828 = vset.pattern.permute.xlu0 0
      %829 = vperm.xlu0 %828, %v805
      %v830 = vpop.permute.xlu0 %829
      %831 = vset.pattern.permute.xlu0 0
      %832 = vperm.xlu0 %831, %v806
      %v833 = vpop.permute.xlu0 %832
      %834 = vset.pattern.permute.xlu0 0
      %835 = vperm.xlu0 %834, %v807
      %v836 = vpop.permute.xlu0 %835
      %837 = vset.pattern.permute.xlu0 0
      %838 = vperm.xlu0 %837, %v808
      %v839 = vpop.permute.xlu0 %838
      %840 = vset.pattern.permute.xlu0 0
      %841 = vperm.xlu0 %840, %v809
      %v842 = vpop.permute.xlu0 %841
      %843 = vset.pattern.permute.xlu0 0
      %844 = vperm.xlu0 %843, %v810
      %v845 = vpop.permute.xlu0 %844
      %846 = vset.pattern.permute.xlu0 0
      %847 = vperm.xlu0 %846, %v811
      %v848 = vpop.permute.xlu0 %847
      %849 = vset.pattern.permute.xlu0 0
      %850 = vperm.xlu0 %849, %v812
      %v851 = vpop.permute.xlu0 %850
      %852 = vset.pattern.permute.xlu0 0
      %853 = vperm.xlu0 %852, %v813
      %v854 = vpop.permute.xlu0 %853
      %855 = vset.pattern.permute.xlu0 0
      %856 = vperm.xlu0 %855, %v814
      %v857 = vpop.permute.xlu0 %856
      %858 = vset.pattern.permute.xlu0 0
      %859 = vperm.xlu0 %858, %v815
      %v860 = vpop.permute.xlu0 %859
      %861 = vset.pattern.permute.xlu0 0
      %862 = vperm.xlu0 %861, %v816
      %v863 = vpop.permute.xlu0 %862
      %864 = vset.pattern.permute.xlu0 0
      %865 = vperm.xlu0 %864, %v817
      %v866 = vpop.permute.xlu0 %865
      %v867 = vperm.slane %v818, 0
      %v868 = vmul.u32 %v821, %v867
      %v869 = vmul.u32 %v824, %v867
      %v870 = vmul.u32 %v827, %v867
      %v871 = vmul.u32 %v830, %v867
      %v872 = vmul.u32 %v833, %v867
      %v873 = vmul.u32 %v836, %v867
      %v874 = vmul.u32 %v839, %v867
      %v875 = vmul.u32 %v842, %v867
      %v876 = vmul.u32 %v845, %v867
      %v877 = vmul.u32 %v848, %v867
      %v878 = vmul.u32 %v851, %v867
      %v879 = vmul.u32 %v854, %v867
      %v880 = vmul.u32 %v857, %v867
      %v881 = vmul.u32 %v860, %v867
      %v882 = vmul.u32 %v863, %v867
      %v883 = vmul.u32 %v866, %v867
      %v884 = vld [vmem:[%s200] sm:$0xff]
      %v885 = vld [vmem:[%s200 + $0x8] sm:$0xff]
      %v886 = vld [vmem:[%s200 + $0x10] sm:$0xff]
      %v887 = vld [vmem:[%s200 + $0x18] sm:$0xff]
      %v888 = vld [vmem:[%s200 + $0x20] sm:$0xff]
      %v889 = vld [vmem:[%s200 + $0x28] sm:$0xff]
      %v890 = vld [vmem:[%s200 + $0x30] sm:$0xff]
      %v891 = vld [vmem:[%s200 + $0x38] sm:$0xff]
      %v892 = vld [vmem:[%s200 + $0x40] sm:$0xff]
      %v893 = vld [vmem:[%s200 + $0x48] sm:$0xff]
      %v894 = vld [vmem:[%s200 + $0x50] sm:$0xff]
      %v895 = vld [vmem:[%s200 + $0x58] sm:$0xff]
      %v896 = vld [vmem:[%s200 + $0x60] sm:$0xff]
      %v897 = vld [vmem:[%s200 + $0x68] sm:$0xff]
      %v898 = vld [vmem:[%s200 + $0x70] sm:$0xff]
      %v899 = vld [vmem:[%s200 + $0x78] sm:$0xff]
      %v900 = vld [vmem:[%s208] sm:$0x1]
      %901 = vset.pattern.permute.xlu0 0
      %902 = vperm.xlu0 %901, %v884
      %v903 = vpop.permute.xlu0 %902
      %904 = vset.pattern.permute.xlu0 0
      %905 = vperm.xlu0 %904, %v885
      %v906 = vpop.permute.xlu0 %905
      %907 = vset.pattern.permute.xlu0 0
      %908 = vperm.xlu0 %907, %v886
      %v909 = vpop.permute.xlu0 %908
      %910 = vset.pattern.permute.xlu0 0
      %911 = vperm.xlu0 %910, %v887
      %v912 = vpop.permute.xlu0 %911
      %913 = vset.pattern.permute.xlu0 0
      %914 = vperm.xlu0 %913, %v888
      %v915 = vpop.permute.xlu0 %914
      %916 = vset.pattern.permute.xlu0 0
      %917 = vperm.xlu0 %916, %v889
      %v918 = vpop.permute.xlu0 %917
      %919 = vset.pattern.permute.xlu0 0
      %920 = vperm.xlu0 %919, %v890
      %v921 = vpop.permute.xlu0 %920
      %922 = vset.pattern.permute.xlu0 0
      %923 = vperm.xlu0 %922, %v891
      %v924 = vpop.permute.xlu0 %923
      %925 = vset.pattern.permute.xlu0 0
      %926 = vperm.xlu0 %925, %v892
      %v927 = vpop.permute.xlu0 %926
      %928 = vset.pattern.permute.xlu0 0
      %929 = vperm.xlu0 %928, %v893
      %v930 = vpop.permute.xlu0 %929
      %931 = vset.pattern.permute.xlu0 0
      %932 = vperm.xlu0 %931, %v894
      %v933 = vpop.permute.xlu0 %932
      %934 = vset.pattern.permute.xlu0 0
      %935 = vperm.xlu0 %934, %v895
      %v936 = vpop.permute.xlu0 %935
      %937 = vset.pattern.permute.xlu0 0
      %938 = vperm.xlu0 %937, %v896
      %v939 = vpop.permute.xlu0 %938
      %940 = vset.pattern.permute.xlu0 0
      %941 = vperm.xlu0 %940, %v897
      %v942 = vpop.permute.xlu0 %941
      %943 = vset.pattern.permute.xlu0 0
      %944 = vperm.xlu0 %943, %v898
      %v945 = vpop.permute.xlu0 %944
      %946 = vset.pattern.permute.xlu0 0
      %947 = vperm.xlu0 %946, %v899
      %v948 = vpop.permute.xlu0 %947
      %v949 = vperm.slane %v900, 0
      %vm950 = vcmp.eq.s32.totalorder %v903, %v949
      %vm951 = vcmp.eq.s32.totalorder %v906, %v949
      %vm952 = vcmp.eq.s32.totalorder %v909, %v949
      %vm953 = vcmp.eq.s32.totalorder %v912, %v949
      %vm954 = vcmp.eq.s32.totalorder %v915, %v949
      %vm955 = vcmp.eq.s32.totalorder %v918, %v949
      %vm956 = vcmp.eq.s32.totalorder %v921, %v949
      %vm957 = vcmp.eq.s32.totalorder %v924, %v949
      %vm958 = vcmp.eq.s32.totalorder %v927, %v949
      %vm959 = vcmp.eq.s32.totalorder %v930, %v949
      %vm960 = vcmp.eq.s32.totalorder %v933, %v949
      %vm961 = vcmp.eq.s32.totalorder %v936, %v949
      %vm962 = vcmp.eq.s32.totalorder %v939, %v949
      %vm963 = vcmp.eq.s32.totalorder %v942, %v949
      %vm964 = vcmp.eq.s32.totalorder %v945, %v949
      %vm965 = vcmp.eq.s32.totalorder %v948, %v949
      %vm966 = vcmp.eq.s32.totalorder %v868, 3
      %vm967 = vcmp.eq.s32.totalorder %v869, 3
      %vm968 = vcmp.eq.s32.totalorder %v870, 3
      %vm969 = vcmp.eq.s32.totalorder %v871, 3
      %vm970 = vcmp.eq.s32.totalorder %v872, 3
      %vm971 = vcmp.eq.s32.totalorder %v873, 3
      %vm972 = vcmp.eq.s32.totalorder %v874, 3
      %vm973 = vcmp.eq.s32.totalorder %v875, 3
      %vm974 = vcmp.eq.s32.totalorder %v876, 3
      %vm975 = vcmp.eq.s32.totalorder %v877, 3
      %vm976 = vcmp.eq.s32.totalorder %v878, 3
      %vm977 = vcmp.eq.s32.totalorder %v879, 3
      %vm978 = vcmp.eq.s32.totalorder %v880, 3
      %vm979 = vcmp.eq.s32.totalorder %v881, 3
      %vm980 = vcmp.eq.s32.totalorder %v882, 3
      %vm981 = vcmp.eq.s32.totalorder %v883, 3
      %vm982 = vcmp.eq.s32.totalorder %v868, 6
      %vm983 = vcmp.eq.s32.totalorder %v869, 6
      %vm984 = vcmp.eq.s32.totalorder %v870, 6
      %vm985 = vcmp.eq.s32.totalorder %v871, 6
      %vm986 = vcmp.eq.s32.totalorder %v872, 6
      %vm987 = vcmp.eq.s32.totalorder %v873, 6
      %vm988 = vcmp.eq.s32.totalorder %v874, 6
      %vm989 = vcmp.eq.s32.totalorder %v875, 6
      %vm990 = vcmp.eq.s32.totalorder %v876, 6
      %vm991 = vcmp.eq.s32.totalorder %v877, 6
      %vm992 = vcmp.eq.s32.totalorder %v878, 6
      %vm993 = vcmp.eq.s32.totalorder %v879, 6
      %vm994 = vcmp.eq.s32.totalorder %v880, 6
      %vm995 = vcmp.eq.s32.totalorder %v881, 6
      %vm996 = vcmp.eq.s32.totalorder %v882, 6
      %vm997 = vcmp.eq.s32.totalorder %v883, 6
      %vm998 = vmor %vm966, %vm982
      %vm999 = vmor %vm967, %vm983
      %vm1000 = vmor %vm968, %vm984
      %vm1001 = vmor %vm969, %vm985
      %vm1002 = vmor %vm970, %vm986
      %vm1003 = vmor %vm971, %vm987
      %vm1004 = vmor %vm972, %vm988
      %vm1005 = vmor %vm973, %vm989
      %vm1006 = vmor %vm974, %vm990
      %vm1007 = vmor %vm975, %vm991
      %vm1008 = vmor %vm976, %vm992
      %vm1009 = vmor %vm977, %vm993
      %vm1010 = vmor %vm978, %vm994
      %vm1011 = vmor %vm979, %vm995
      %vm1012 = vmor %vm980, %vm996
      %vm1013 = vmor %vm981, %vm997
      %vm1014 = vmand %vm950, %vm998
      %vm1015 = vmand %vm951, %vm999
      %vm1016 = vmand %vm952, %vm1000
      %vm1017 = vmand %vm953, %vm1001
      %vm1018 = vmand %vm954, %vm1002
      %vm1019 = vmand %vm955, %vm1003
      %vm1020 = vmand %vm956, %vm1004
      %vm1021 = vmand %vm957, %vm1005
      %vm1022 = vmand %vm958, %vm1006
      %vm1023 = vmand %vm959, %vm1007
      %vm1024 = vmand %vm960, %vm1008
      %vm1025 = vmand %vm961, %vm1009
      %vm1026 = vmand %vm962, %vm1010
      %vm1027 = vmand %vm963, %vm1011
      %vm1028 = vmand %vm964, %vm1012
      %vm1029 = vmand %vm965, %vm1013
      %v1030 = vlaneseq
      %v1031 = vshrl.u32 %v1030, 7
      %v1032 = vadd.s32 %v1031, 8
      %v1033 = vadd.s32 %v1031, 16
      %v1034 = vadd.s32 %v1031, 24
      %v1035 = vadd.s32 %v1031, 32
      %v1036 = vadd.s32 %v1031, 40
      %v1037 = vadd.s32 %v1031, 48
      %v1038 = vadd.s32 %v1031, 56
      %v1039 = vadd.s32 %v1031, 64
      %v1040 = vadd.s32 %v1031, 72
      %v1041 = vadd.s32 %v1031, 80
      %v1042 = vadd.s32 %v1031, 88
      %v1043 = vadd.s32 %v1031, 96
      %v1044 = vadd.s32 %v1031, 104
      %v1045 = vadd.s32 %v1031, 112
      %v1046 = vadd.s32 %v1031, 120
      %v1047 = vlaneseq
      %v1048 = vand.u32 %v1047, 127
      %vm1049 = vcmp.gt.s32.totalorder %v1048, %v1031
      %vm1050 = vcmp.gt.s32.totalorder %v1048, %v1032
      %vm1051 = vcmp.gt.s32.totalorder %v1048, %v1033
      %vm1052 = vcmp.gt.s32.totalorder %v1048, %v1034
      %vm1053 = vcmp.gt.s32.totalorder %v1048, %v1035
      %vm1054 = vcmp.gt.s32.totalorder %v1048, %v1036
      %vm1055 = vcmp.gt.s32.totalorder %v1048, %v1037
      %vm1056 = vcmp.gt.s32.totalorder %v1048, %v1038
      %vm1057 = vcmp.gt.s32.totalorder %v1048, %v1039
      %vm1058 = vcmp.gt.s32.totalorder %v1048, %v1040
      %vm1059 = vcmp.gt.s32.totalorder %v1048, %v1041
      %vm1060 = vcmp.gt.s32.totalorder %v1048, %v1042
      %vm1061 = vcmp.gt.s32.totalorder %v1048, %v1043
      %vm1062 = vcmp.gt.s32.totalorder %v1048, %v1044
      %vm1063 = vcmp.gt.s32.totalorder %v1048, %v1045
      %vm1064 = vcmp.gt.s32.totalorder %v1048, %v1046
      %vm1065 = vmand %vm1014, %vm1049
      %vm1066 = vmand %vm1015, %vm1050
      %vm1067 = vmand %vm1016, %vm1051
      %vm1068 = vmand %vm1017, %vm1052
      %vm1069 = vmand %vm1018, %vm1053
      %vm1070 = vmand %vm1019, %vm1054
      %vm1071 = vmand %vm1020, %vm1055
      %vm1072 = vmand %vm1021, %vm1056
      %vm1073 = vmand %vm1022, %vm1057
      %vm1074 = vmand %vm1023, %vm1058
      %vm1075 = vmand %vm1024, %vm1059
      %vm1076 = vmand %vm1025, %vm1060
      %vm1077 = vmand %vm1026, %vm1061
      %vm1078 = vmand %vm1027, %vm1062
      %vm1079 = vmand %vm1028, %vm1063
      %vm1080 = vmand %vm1029, %vm1064
      %v1081 = vsel %vm1065, %v621, 0.0
      %v1082 = vsel %vm1066, %v633, 0.0
      %v1083 = vsel %vm1067, %v645, 0.0
      %v1084 = vsel %vm1068, %v657, 0.0
      %v1085 = vsel %vm1069, %v669, 0.0
      %v1086 = vsel %vm1070, %v681, 0.0
      %v1087 = vsel %vm1071, %v693, 0.0
      %v1088 = vsel %vm1072, %v705, 0.0
      %v1089 = vsel %vm1073, %v717, 0.0
      %v1090 = vsel %vm1074, %v729, 0.0
      %v1091 = vsel %vm1075, %v741, 0.0
      %v1092 = vsel %vm1076, %v753, 0.0
      %v1093 = vsel %vm1077, %v765, 0.0
      %v1094 = vsel %vm1078, %v777, 0.0
      %v1095 = vsel %vm1079, %v789, 0.0
      %v1096 = vsel %vm1080, %v801, 0.0
      %v1097 = vadd.f32 %v1081, %v1082
      %v1098 = vadd.f32 %v1083, %v1084
      %v1099 = vadd.f32 %v1085, %v1086
      %v1100 = vadd.f32 %v1087, %v1088
      %v1101 = vadd.f32 %v1089, %v1090
      %v1102 = vadd.f32 %v1091, %v1092
      %v1103 = vadd.f32 %v1093, %v1094
      %v1104 = vadd.f32 %v1095, %v1096
      %v1105 = vadd.f32 %v1097, %v1098
      %v1106 = vadd.f32 %v1099, %v1100
      %v1107 = vadd.f32 %v1101, %v1102
      %v1108 = vadd.f32 %v1103, %v1104
      %v1109 = vadd.f32 %v1105, %v1106
      %v1110 = vadd.f32 %v1107, %v1108
      %v1111 = vadd.f32 %v1109, %v1110
      %1112 = vst [vmem:[#allocation6] sm:$0xff] %v1111
    $region37: #{tpu_custom_call.1} parent=1 // pred_fallthru
      _
    %p1113 = scmp.eq.s32.totalorder %s231, 1
    // Predicated region
    $region38: #{tpu_custom_call.1} parent=1 // pred_check
      %p1114 = pneg %p1113
    $region39: #{tpu_custom_call.1} parent=1 // pred_check_branch
      %1116 = sbr.rel (%p1114) target = $region41
    $region40: #{tpu_custom_call.1} parent=1 // pred_region
      %v1117 = vld [vmem:[%s163] sm:$0xf]
      %v1118 = vld [vmem:[%s163 + $0x4] sm:$0xf]
      %v1119 = vld [vmem:[%s163 + $0x8] sm:$0xf]
      %v1120 = vld [vmem:[%s163 + $0xc] sm:$0xf]
      %v1121 = vld [vmem:[%s163 + $0x10] sm:$0xf]
      %v1122 = vld [vmem:[%s163 + $0x14] sm:$0xf]
      %v1123 = vld [vmem:[%s163 + $0x18] sm:$0xf]
      %v1124 = vld [vmem:[%s163 + $0x1c] sm:$0xf]
      %v1125 = vld [vmem:[%s163 + $0x20] sm:$0xf]
      %v1126 = vld [vmem:[%s163 + $0x24] sm:$0xf]
      %v1127 = vld [vmem:[%s163 + $0x28] sm:$0xf]
      %v1128 = vld [vmem:[%s163 + $0x2c] sm:$0xf]
      %v1129 = vld [vmem:[%s163 + $0x30] sm:$0xf]
      %v1130 = vld [vmem:[%s163 + $0x34] sm:$0xf]
      %v1131 = vld [vmem:[%s163 + $0x38] sm:$0xf]
      %v1132 = vld [vmem:[%s163 + $0x3c] sm:$0xf]
      %v1133 = vld [vmem:[%s173] sm:$0xf]
      %v1134 = vld [vmem:[%s173 + $0x4] sm:$0xf]
      %v1135 = vld [vmem:[%s173 + $0x8] sm:$0xf]
      %v1136 = vld [vmem:[%s173 + $0xc] sm:$0xf]
      %v1137 = vld [vmem:[%s173 + $0x10] sm:$0xf]
      %v1138 = vld [vmem:[%s173 + $0x14] sm:$0xf]
      %v1139 = vld [vmem:[%s173 + $0x18] sm:$0xf]
      %v1140 = vld [vmem:[%s173 + $0x1c] sm:$0xf]
      %v1141 = vld [vmem:[%s173 + $0x20] sm:$0xf]
      %v1142 = vld [vmem:[%s173 + $0x24] sm:$0xf]
      %v1143 = vld [vmem:[%s173 + $0x28] sm:$0xf]
      %v1144 = vld [vmem:[%s173 + $0x2c] sm:$0xf]
      %v1145 = vld [vmem:[%s173 + $0x30] sm:$0xf]
      %v1146 = vld [vmem:[%s173 + $0x34] sm:$0xf]
      %v1147 = vld [vmem:[%s173 + $0x38] sm:$0xf]
      %v1148 = vld [vmem:[%s173 + $0x3c] sm:$0xf]
      %v1165 = vunpack.c.l.b16 %v1117
      %v1166 = vunpack.c.l.b16 %v1118
      %v1167 = vunpack.c.l.b16 %v1119
      %v1168 = vunpack.c.l.b16 %v1120
      %v1169 = vunpack.c.l.b16 %v1121
      %v1170 = vunpack.c.l.b16 %v1122
      %v1171 = vunpack.c.l.b16 %v1123
      %v1172 = vunpack.c.l.b16 %v1124
      %v1173 = vunpack.c.l.b16 %v1125
      %v1174 = vunpack.c.l.b16 %v1126
      %v1175 = vunpack.c.l.b16 %v1127
      %v1176 = vunpack.c.l.b16 %v1128
      %v1177 = vunpack.c.l.b16 %v1129
      %v1178 = vunpack.c.l.b16 %v1130
      %v1179 = vunpack.c.l.b16 %v1131
      %v1180 = vunpack.c.l.b16 %v1132
      %v1181 = vpack.c.b16 %v1166, %v1165
      %v1182 = vpack.c.b16 %v1168, %v1167
      %v1183 = vpack.c.b16 %v1170, %v1169
      %v1184 = vpack.c.b16 %v1172, %v1171
      %v1185 = vpack.c.b16 %v1174, %v1173
      %v1186 = vpack.c.b16 %v1176, %v1175
      %v1187 = vpack.c.b16 %v1178, %v1177
      %v1188 = vpack.c.b16 %v1180, %v1179
      %v1205 = vunpack.c.l.b16 %v1133
      %v1206 = vunpack.c.l.b16 %v1134
      %v1207 = vunpack.c.l.b16 %v1135
      %v1208 = vunpack.c.l.b16 %v1136
      %v1209 = vunpack.c.l.b16 %v1137
      %v1210 = vunpack.c.l.b16 %v1138
      %v1211 = vunpack.c.l.b16 %v1139
      %v1212 = vunpack.c.l.b16 %v1140
      %v1213 = vunpack.c.l.b16 %v1141
      %v1214 = vunpack.c.l.b16 %v1142
      %v1215 = vunpack.c.l.b16 %v1143
      %v1216 = vunpack.c.l.b16 %v1144
      %v1217 = vunpack.c.l.b16 %v1145
      %v1218 = vunpack.c.l.b16 %v1146
      %v1219 = vunpack.c.l.b16 %v1147
      %v1220 = vunpack.c.l.b16 %v1148
      %v1221 = vpack.c.b16 %v1206, %v1205
      %v1222 = vpack.c.b16 %v1208, %v1207
      %v1223 = vpack.c.b16 %v1210, %v1209
      %v1224 = vpack.c.b16 %v1212, %v1211
      %v1225 = vpack.c.b16 %v1214, %v1213
      %v1226 = vpack.c.b16 %v1216, %v1215
      %v1227 = vpack.c.b16 %v1218, %v1217
      %v1228 = vpack.c.b16 %v1220, %v1219
      %vm1229 = vcmask 261120
      %v1231 = vsel %vm1229, %v1181, 0
      %v1234 = vsel %vm1229, %v1182, 0
      %v1237 = vsel %vm1229, %v1183, 0
      %v1240 = vsel %vm1229, %v1184, 0
      %v1243 = vsel %vm1229, %v1185, 0
      %v1246 = vsel %vm1229, %v1186, 0
      %v1249 = vsel %vm1229, %v1187, 0
      %v1252 = vsel %vm1229, %v1188, 0
      %v1255 = vsel %vm1229, %v1221, 0
      %v1258 = vsel %vm1229, %v1222, 0
      %v1261 = vsel %vm1229, %v1223, 0
      %v1264 = vsel %vm1229, %v1224, 0
      %v1267 = vsel %vm1229, %v1225, 0
      %v1270 = vsel %vm1229, %v1226, 0
      %v1273 = vsel %vm1229, %v1227, 0
      %v1276 = vsel %vm1229, %v1228, 0
      %1278 = vmatpush.bf16.xpose.msra.mxu0 %v1276
      %1279 = vmatpush.bf16.xpose.msra.mxu0 %v1273
      %1280 = vmatpush.bf16.xpose.msra.mxu0 %v1270
      %1281 = vmatpush.bf16.xpose.msra.mxu0 %v1267
      %1282 = vmatpush.bf16.xpose.msra.mxu0 %v1264
      %1283 = vmatpush.bf16.xpose.msra.mxu0 %v1261
      %1284 = vmatpush.bf16.xpose.msra.mxu0 %v1258
      %1285 = vmatpush.bf16.xpose.msra.mxu0 %v1255
      %1286 = vmatmul.bf16.gmra.mxu0 %v1231
      %v1287 = vpop.f32.mrf.mxu0
      %v1288 = vadd.f32 0.0, %v1287
      %v1289 = vpop.f32.mrf.mxu0
      %v1290 = vadd.f32 0.0, %v1289
      %1291 = vmatmul.bf16.gmra.mxu0 %v1234
      %v1292 = vpop.f32.mrf.mxu0
      %v1293 = vadd.f32 0.0, %v1292
      %v1294 = vpop.f32.mrf.mxu0
      %v1295 = vadd.f32 0.0, %v1294
      %1296 = vmatmul.bf16.gmra.mxu0 %v1237
      %v1297 = vpop.f32.mrf.mxu0
      %v1298 = vadd.f32 0.0, %v1297
      %v1299 = vpop.f32.mrf.mxu0
      %v1300 = vadd.f32 0.0, %v1299
      %1301 = vmatmul.bf16.gmra.mxu0 %v1240
      %v1302 = vpop.f32.mrf.mxu0
      %v1303 = vadd.f32 0.0, %v1302
      %v1304 = vpop.f32.mrf.mxu0
      %v1305 = vadd.f32 0.0, %v1304
      %1306 = vmatmul.bf16.gmra.mxu0 %v1243
      %v1307 = vpop.f32.mrf.mxu0
      %v1308 = vadd.f32 0.0, %v1307
      %v1309 = vpop.f32.mrf.mxu0
      %v1310 = vadd.f32 0.0, %v1309
      %1311 = vmatmul.bf16.gmra.mxu0 %v1246
      %v1312 = vpop.f32.mrf.mxu0
      %v1313 = vadd.f32 0.0, %v1312
      %v1314 = vpop.f32.mrf.mxu0
      %v1315 = vadd.f32 0.0, %v1314
      %1316 = vmatmul.bf16.gmra.mxu0 %v1249
      %v1317 = vpop.f32.mrf.mxu0
      %v1318 = vadd.f32 0.0, %v1317
      %v1319 = vpop.f32.mrf.mxu0
      %v1320 = vadd.f32 0.0, %v1319
      %1321 = vmatmul.bf16.gmra.mxu0 %v1252
      %v1322 = vpop.f32.mrf.mxu0
      %v1323 = vadd.f32 0.0, %v1322
      %v1324 = vpop.f32.mrf.mxu0
      %v1325 = vadd.f32 0.0, %v1324
      %1326 = vdwg.mxu0
      %v1327 = vld [vmem:[%s183] sm:$0xff]
      %v1328 = vld [vmem:[%s183 + $0x8] sm:$0xff]
      %v1329 = vld [vmem:[%s183 + $0x10] sm:$0xff]
      %v1330 = vld [vmem:[%s183 + $0x18] sm:$0xff]
      %v1331 = vld [vmem:[%s183 + $0x20] sm:$0xff]
      %v1332 = vld [vmem:[%s183 + $0x28] sm:$0xff]
      %v1333 = vld [vmem:[%s183 + $0x30] sm:$0xff]
      %v1334 = vld [vmem:[%s183 + $0x38] sm:$0xff]
      %v1335 = vld [vmem:[%s183 + $0x40] sm:$0xff]
      %v1336 = vld [vmem:[%s183 + $0x48] sm:$0xff]
      %v1337 = vld [vmem:[%s183 + $0x50] sm:$0xff]
      %v1338 = vld [vmem:[%s183 + $0x58] sm:$0xff]
      %v1339 = vld [vmem:[%s183 + $0x60] sm:$0xff]
      %v1340 = vld [vmem:[%s183 + $0x68] sm:$0xff]
      %v1341 = vld [vmem:[%s183 + $0x70] sm:$0xff]
      %v1342 = vld [vmem:[%s183 + $0x78] sm:$0xff]
      %v1343 = vld [vmem:[%s191] sm:$0x1]
      %1345 = vset.pattern.permute.xlu0 0
      %1346 = vperm.xlu0 %1345, %v1327
      %v1347 = vpop.permute.xlu0 %1346
      %1350 = vset.pattern.permute.xlu0 0
      %1351 = vperm.xlu0 %1350, %v1328
      %v1352 = vpop.permute.xlu0 %1351
      %1355 = vset.pattern.permute.xlu0 0
      %1356 = vperm.xlu0 %1355, %v1329
      %v1357 = vpop.permute.xlu0 %1356
      %1360 = vset.pattern.permute.xlu0 0
      %1361 = vperm.xlu0 %1360, %v1330
      %v1362 = vpop.permute.xlu0 %1361
      %1365 = vset.pattern.permute.xlu0 0
      %1366 = vperm.xlu0 %1365, %v1331
      %v1367 = vpop.permute.xlu0 %1366
      %1370 = vset.pattern.permute.xlu0 0
      %1371 = vperm.xlu0 %1370, %v1332
      %v1372 = vpop.permute.xlu0 %1371
      %1375 = vset.pattern.permute.xlu0 0
      %1376 = vperm.xlu0 %1375, %v1333
      %v1377 = vpop.permute.xlu0 %1376
      %1380 = vset.pattern.permute.xlu0 0
      %1381 = vperm.xlu0 %1380, %v1334
      %v1382 = vpop.permute.xlu0 %1381
      %1385 = vset.pattern.permute.xlu0 0
      %1386 = vperm.xlu0 %1385, %v1335
      %v1387 = vpop.permute.xlu0 %1386
      %1390 = vset.pattern.permute.xlu0 0
      %1391 = vperm.xlu0 %1390, %v1336
      %v1392 = vpop.permute.xlu0 %1391
      %1395 = vset.pattern.permute.xlu0 0
      %1396 = vperm.xlu0 %1395, %v1337
      %v1397 = vpop.permute.xlu0 %1396
      %1400 = vset.pattern.permute.xlu0 0
      %1401 = vperm.xlu0 %1400, %v1338
      %v1402 = vpop.permute.xlu0 %1401
      %1405 = vset.pattern.permute.xlu0 0
      %1406 = vperm.xlu0 %1405, %v1339
      %v1407 = vpop.permute.xlu0 %1406
      %1410 = vset.pattern.permute.xlu0 0
      %1411 = vperm.xlu0 %1410, %v1340
      %v1412 = vpop.permute.xlu0 %1411
      %1415 = vset.pattern.permute.xlu0 0
      %1416 = vperm.xlu0 %1415, %v1341
      %v1417 = vpop.permute.xlu0 %1416
      %1420 = vset.pattern.permute.xlu0 0
      %1421 = vperm.xlu0 %1420, %v1342
      %v1422 = vpop.permute.xlu0 %1421
      %v1425 = vperm.slane %v1343, 0
      %v1427 = vadd.f32 %v1347, %v1425
      %v1428 = vadd.f32 %v1352, %v1425
      %v1429 = vadd.f32 %v1357, %v1425
      %v1430 = vadd.f32 %v1362, %v1425
      %v1431 = vadd.f32 %v1367, %v1425
      %v1432 = vadd.f32 %v1372, %v1425
      %v1433 = vadd.f32 %v1377, %v1425
      %v1434 = vadd.f32 %v1382, %v1425
      %v1435 = vadd.f32 %v1387, %v1425
      %v1436 = vadd.f32 %v1392, %v1425
      %v1437 = vadd.f32 %v1397, %v1425
      %v1438 = vadd.f32 %v1402, %v1425
      %v1439 = vadd.f32 %v1407, %v1425
      %v1440 = vadd.f32 %v1412, %v1425
      %v1441 = vadd.f32 %v1417, %v1425
      %v1442 = vadd.f32 %v1422, %v1425
      %v1443 = vmul.f32 %v1288, 2.0
      %v1444 = vmul.f32 %v1290, 2.0
      %v1445 = vmul.f32 %v1293, 2.0
      %v1446 = vmul.f32 %v1295, 2.0
      %v1447 = vmul.f32 %v1298, 2.0
      %v1448 = vmul.f32 %v1300, 2.0
      %v1449 = vmul.f32 %v1303, 2.0
      %v1450 = vmul.f32 %v1305, 2.0
      %v1451 = vmul.f32 %v1308, 2.0
      %v1452 = vmul.f32 %v1310, 2.0
      %v1453 = vmul.f32 %v1313, 2.0
      %v1454 = vmul.f32 %v1315, 2.0
      %v1455 = vmul.f32 %v1318, 2.0
      %v1456 = vmul.f32 %v1320, 2.0
      %v1457 = vmul.f32 %v1323, 2.0
      %v1458 = vmul.f32 %v1325, 2.0
      %v1459 = vsub.f32 %v1427, %v1443
      %v1460 = vsub.f32 %v1428, %v1444
      %v1461 = vsub.f32 %v1429, %v1445
      %v1462 = vsub.f32 %v1430, %v1446
      %v1463 = vsub.f32 %v1431, %v1447
      %v1464 = vsub.f32 %v1432, %v1448
      %v1465 = vsub.f32 %v1433, %v1449
      %v1466 = vsub.f32 %v1434, %v1450
      %v1467 = vsub.f32 %v1435, %v1451
      %v1468 = vsub.f32 %v1436, %v1452
      %v1469 = vsub.f32 %v1437, %v1453
      %v1470 = vsub.f32 %v1438, %v1454
      %v1471 = vsub.f32 %v1439, %v1455
      %v1472 = vsub.f32 %v1440, %v1456
      %v1473 = vsub.f32 %v1441, %v1457
      %v1474 = vsub.f32 %v1442, %v1458
      %v1475 = vmax.f32 %v1459, 1e-12
      %v1476 = vmax.f32 %v1460, 1e-12
      %v1477 = vmax.f32 %v1461, 1e-12
      %v1478 = vmax.f32 %v1462, 1e-12
      %v1479 = vmax.f32 %v1463, 1e-12
      %v1480 = vmax.f32 %v1464, 1e-12
      %v1481 = vmax.f32 %v1465, 1e-12
      %v1482 = vmax.f32 %v1466, 1e-12
      %v1483 = vmax.f32 %v1467, 1e-12
      %v1484 = vmax.f32 %v1468, 1e-12
      %v1485 = vmax.f32 %v1469, 1e-12
      %v1486 = vmax.f32 %v1470, 1e-12
      %v1487 = vmax.f32 %v1471, 1e-12
      %v1488 = vmax.f32 %v1472, 1e-12
      %v1489 = vmax.f32 %v1473, 1e-12
      %v1490 = vmax.f32 %v1474, 1e-12
      %v1491 = vrsqrt.pop %v1475
      %v1492 = vmul.f32 %v1491, %v1475
      %v1493 = vmul.f32 %v1492, %v1491
      %v1494 = vmul.f32 0.5, %v1493
      %v1495 = vsub.f32 1.5, %v1494
      %v1496 = vmul.f32 %v1491, %v1495
      %v1497 = vmul.f32 %v1475, %v1496
      %vm1498 = vcmp.eq.f32.partialorder %v1475, inf
      %v1499 = vsel %vm1498, %v1475, %v1497
      %vm1500 = vcmp.eq.f32.partialorder %v1475, 0.0
      %v1501 = vand.u32 %v1475, 2147483648
      %v1502 = vsel %vm1500, %v1501, %v1499
      %v1503 = vrsqrt.pop %v1476
      %v1504 = vmul.f32 %v1503, %v1476
      %v1505 = vmul.f32 %v1504, %v1503
      %v1506 = vmul.f32 0.5, %v1505
      %v1507 = vsub.f32 1.5, %v1506
      %v1508 = vmul.f32 %v1503, %v1507
      %v1509 = vmul.f32 %v1476, %v1508
      %vm1510 = vcmp.eq.f32.partialorder %v1476, inf
      %v1511 = vsel %vm1510, %v1476, %v1509
      %vm1512 = vcmp.eq.f32.partialorder %v1476, 0.0
      %v1513 = vand.u32 %v1476, 2147483648
      %v1514 = vsel %vm1512, %v1513, %v1511
      %v1515 = vrsqrt.pop %v1477
      %v1516 = vmul.f32 %v1515, %v1477
      %v1517 = vmul.f32 %v1516, %v1515
      %v1518 = vmul.f32 0.5, %v1517
      %v1519 = vsub.f32 1.5, %v1518
      %v1520 = vmul.f32 %v1515, %v1519
      %v1521 = vmul.f32 %v1477, %v1520
      %vm1522 = vcmp.eq.f32.partialorder %v1477, inf
      %v1523 = vsel %vm1522, %v1477, %v1521
      %vm1524 = vcmp.eq.f32.partialorder %v1477, 0.0
      %v1525 = vand.u32 %v1477, 2147483648
      %v1526 = vsel %vm1524, %v1525, %v1523
      %v1527 = vrsqrt.pop %v1478
      %v1528 = vmul.f32 %v1527, %v1478
      %v1529 = vmul.f32 %v1528, %v1527
      %v1530 = vmul.f32 0.5, %v1529
      %v1531 = vsub.f32 1.5, %v1530
      %v1532 = vmul.f32 %v1527, %v1531
      %v1533 = vmul.f32 %v1478, %v1532
      %vm1534 = vcmp.eq.f32.partialorder %v1478, inf
      %v1535 = vsel %vm1534, %v1478, %v1533
      %vm1536 = vcmp.eq.f32.partialorder %v1478, 0.0
      %v1537 = vand.u32 %v1478, 2147483648
      %v1538 = vsel %vm1536, %v1537, %v1535
      %v1539 = vrsqrt.pop %v1479
      %v1540 = vmul.f32 %v1539, %v1479
      %v1541 = vmul.f32 %v1540, %v1539
      %v1542 = vmul.f32 0.5, %v1541
      %v1543 = vsub.f32 1.5, %v1542
      %v1544 = vmul.f32 %v1539, %v1543
      %v1545 = vmul.f32 %v1479, %v1544
      %vm1546 = vcmp.eq.f32.partialorder %v1479, inf
      %v1547 = vsel %vm1546, %v1479, %v1545
      %vm1548 = vcmp.eq.f32.partialorder %v1479, 0.0
      %v1549 = vand.u32 %v1479, 2147483648
      %v1550 = vsel %vm1548, %v1549, %v1547
      %v1551 = vrsqrt.pop %v1480
      %v1552 = vmul.f32 %v1551, %v1480
      %v1553 = vmul.f32 %v1552, %v1551
      %v1554 = vmul.f32 0.5, %v1553
      %v1555 = vsub.f32 1.5, %v1554
      %v1556 = vmul.f32 %v1551, %v1555
      %v1557 = vmul.f32 %v1480, %v1556
      %vm1558 = vcmp.eq.f32.partialorder %v1480, inf
      %v1559 = vsel %vm1558, %v1480, %v1557
      %vm1560 = vcmp.eq.f32.partialorder %v1480, 0.0
      %v1561 = vand.u32 %v1480, 2147483648
      %v1562 = vsel %vm1560, %v1561, %v1559
      %v1563 = vrsqrt.pop %v1481
      %v1564 = vmul.f32 %v1563, %v1481
      %v1565 = vmul.f32 %v1564, %v1563
      %v1566 = vmul.f32 0.5, %v1565
      %v1567 = vsub.f32 1.5, %v1566
      %v1568 = vmul.f32 %v1563, %v1567
      %v1569 = vmul.f32 %v1481, %v1568
      %vm1570 = vcmp.eq.f32.partialorder %v1481, inf
      %v1571 = vsel %vm1570, %v1481, %v1569
      %vm1572 = vcmp.eq.f32.partialorder %v1481, 0.0
      %v1573 = vand.u32 %v1481, 2147483648
      %v1574 = vsel %vm1572, %v1573, %v1571
      %v1575 = vrsqrt.pop %v1482
      %v1576 = vmul.f32 %v1575, %v1482
      %v1577 = vmul.f32 %v1576, %v1575
      %v1578 = vmul.f32 0.5, %v1577
      %v1579 = vsub.f32 1.5, %v1578
      %v1580 = vmul.f32 %v1575, %v1579
      %v1581 = vmul.f32 %v1482, %v1580
      %vm1582 = vcmp.eq.f32.partialorder %v1482, inf
      %v1583 = vsel %vm1582, %v1482, %v1581
      %vm1584 = vcmp.eq.f32.partialorder %v1482, 0.0
      %v1585 = vand.u32 %v1482, 2147483648
      %v1586 = vsel %vm1584, %v1585, %v1583
      %v1587 = vrsqrt.pop %v1483
      %v1588 = vmul.f32 %v1587, %v1483
      %v1589 = vmul.f32 %v1588, %v1587
      %v1590 = vmul.f32 0.5, %v1589
      %v1591 = vsub.f32 1.5, %v1590
      %v1592 = vmul.f32 %v1587, %v1591
      %v1593 = vmul.f32 %v1483, %v1592
      %vm1594 = vcmp.eq.f32.partialorder %v1483, inf
      %v1595 = vsel %vm1594, %v1483, %v1593
      %vm1596 = vcmp.eq.f32.partialorder %v1483, 0.0
      %v1597 = vand.u32 %v1483, 2147483648
      %v1598 = vsel %vm1596, %v1597, %v1595
      %v1599 = vrsqrt.pop %v1484
      %v1600 = vmul.f32 %v1599, %v1484
      %v1601 = vmul.f32 %v1600, %v1599
      %v1602 = vmul.f32 0.5, %v1601
      %v1603 = vsub.f32 1.5, %v1602
      %v1604 = vmul.f32 %v1599, %v1603
      %v1605 = vmul.f32 %v1484, %v1604
      %vm1606 = vcmp.eq.f32.partialorder %v1484, inf
      %v1607 = vsel %vm1606, %v1484, %v1605
      %vm1608 = vcmp.eq.f32.partialorder %v1484, 0.0
      %v1609 = vand.u32 %v1484, 2147483648
      %v1610 = vsel %vm1608, %v1609, %v1607
      %v1611 = vrsqrt.pop %v1485
      %v1612 = vmul.f32 %v1611, %v1485
      %v1613 = vmul.f32 %v1612, %v1611
      %v1614 = vmul.f32 0.5, %v1613
      %v1615 = vsub.f32 1.5, %v1614
      %v1616 = vmul.f32 %v1611, %v1615
      %v1617 = vmul.f32 %v1485, %v1616
      %vm1618 = vcmp.eq.f32.partialorder %v1485, inf
      %v1619 = vsel %vm1618, %v1485, %v1617
      %vm1620 = vcmp.eq.f32.partialorder %v1485, 0.0
      %v1621 = vand.u32 %v1485, 2147483648
      %v1622 = vsel %vm1620, %v1621, %v1619
      %v1623 = vrsqrt.pop %v1486
      %v1624 = vmul.f32 %v1623, %v1486
      %v1625 = vmul.f32 %v1624, %v1623
      %v1626 = vmul.f32 0.5, %v1625
      %v1627 = vsub.f32 1.5, %v1626
      %v1628 = vmul.f32 %v1623, %v1627
      %v1629 = vmul.f32 %v1486, %v1628
      %vm1630 = vcmp.eq.f32.partialorder %v1486, inf
      %v1631 = vsel %vm1630, %v1486, %v1629
      %vm1632 = vcmp.eq.f32.partialorder %v1486, 0.0
      %v1633 = vand.u32 %v1486, 2147483648
      %v1634 = vsel %vm1632, %v1633, %v1631
      %v1635 = vrsqrt.pop %v1487
      %v1636 = vmul.f32 %v1635, %v1487
      %v1637 = vmul.f32 %v1636, %v1635
      %v1638 = vmul.f32 0.5, %v1637
      %v1639 = vsub.f32 1.5, %v1638
      %v1640 = vmul.f32 %v1635, %v1639
      %v1641 = vmul.f32 %v1487, %v1640
      %vm1642 = vcmp.eq.f32.partialorder %v1487, inf
      %v1643 = vsel %vm1642, %v1487, %v1641
      %vm1644 = vcmp.eq.f32.partialorder %v1487, 0.0
      %v1645 = vand.u32 %v1487, 2147483648
      %v1646 = vsel %vm1644, %v1645, %v1643
      %v1647 = vrsqrt.pop %v1488
      %v1648 = vmul.f32 %v1647, %v1488
      %v1649 = vmul.f32 %v1648, %v1647
      %v1650 = vmul.f32 0.5, %v1649
      %v1651 = vsub.f32 1.5, %v1650
      %v1652 = vmul.f32 %v1647, %v1651
      %v1653 = vmul.f32 %v1488, %v1652
      %vm1654 = vcmp.eq.f32.partialorder %v1488, inf
      %v1655 = vsel %vm1654, %v1488, %v1653
      %vm1656 = vcmp.eq.f32.partialorder %v1488, 0.0
      %v1657 = vand.u32 %v1488, 2147483648
      %v1658 = vsel %vm1656, %v1657, %v1655
      %v1659 = vrsqrt.pop %v1489
      %v1660 = vmul.f32 %v1659, %v1489
      %v1661 = vmul.f32 %v1660, %v1659
      %v1662 = vmul.f32 0.5, %v1661
      %v1663 = vsub.f32 1.5, %v1662
      %v1664 = vmul.f32 %v1659, %v1663
      %v1665 = vmul.f32 %v1489, %v1664
      %vm1666 = vcmp.eq.f32.partialorder %v1489, inf
      %v1667 = vsel %vm1666, %v1489, %v1665
      %vm1668 = vcmp.eq.f32.partialorder %v1489, 0.0
      %v1669 = vand.u32 %v1489, 2147483648
      %v1670 = vsel %vm1668, %v1669, %v1667
      %v1671 = vrsqrt.pop %v1490
      %v1672 = vmul.f32 %v1671, %v1490
      %v1673 = vmul.f32 %v1672, %v1671
      %v1674 = vmul.f32 0.5, %v1673
      %v1675 = vsub.f32 1.5, %v1674
      %v1676 = vmul.f32 %v1671, %v1675
      %v1677 = vmul.f32 %v1490, %v1676
      %vm1678 = vcmp.eq.f32.partialorder %v1490, inf
      %v1679 = vsel %vm1678, %v1490, %v1677
      %vm1680 = vcmp.eq.f32.partialorder %v1490, 0.0
      %v1681 = vand.u32 %v1490, 2147483648
      %v1682 = vsel %vm1680, %v1681, %v1679
      %v1683 = vld [vmem:[%s217] sm:$0xff]
      %v1684 = vld [vmem:[%s217 + $0x8] sm:$0xff]
      %v1685 = vld [vmem:[%s217 + $0x10] sm:$0xff]
      %v1686 = vld [vmem:[%s217 + $0x18] sm:$0xff]
      %v1687 = vld [vmem:[%s217 + $0x20] sm:$0xff]
      %v1688 = vld [vmem:[%s217 + $0x28] sm:$0xff]
      %v1689 = vld [vmem:[%s217 + $0x30] sm:$0xff]
      %v1690 = vld [vmem:[%s217 + $0x38] sm:$0xff]
      %v1691 = vld [vmem:[%s217 + $0x40] sm:$0xff]
      %v1692 = vld [vmem:[%s217 + $0x48] sm:$0xff]
      %v1693 = vld [vmem:[%s217 + $0x50] sm:$0xff]
      %v1694 = vld [vmem:[%s217 + $0x58] sm:$0xff]
      %v1695 = vld [vmem:[%s217 + $0x60] sm:$0xff]
      %v1696 = vld [vmem:[%s217 + $0x68] sm:$0xff]
      %v1697 = vld [vmem:[%s217 + $0x70] sm:$0xff]
      %v1698 = vld [vmem:[%s217 + $0x78] sm:$0xff]
      %v1699 = vld [vmem:[%s225] sm:$0x1]
      %1700 = vset.pattern.permute.xlu0 0
      %1701 = vperm.xlu0 %1700, %v1683
      %v1702 = vpop.permute.xlu0 %1701
      %1703 = vset.pattern.permute.xlu0 0
      %1704 = vperm.xlu0 %1703, %v1684
      %v1705 = vpop.permute.xlu0 %1704
      %1706 = vset.pattern.permute.xlu0 0
      %1707 = vperm.xlu0 %1706, %v1685
      %v1708 = vpop.permute.xlu0 %1707
      %1709 = vset.pattern.permute.xlu0 0
      %1710 = vperm.xlu0 %1709, %v1686
      %v1711 = vpop.permute.xlu0 %1710
      %1712 = vset.pattern.permute.xlu0 0
      %1713 = vperm.xlu0 %1712, %v1687
      %v1714 = vpop.permute.xlu0 %1713
      %1715 = vset.pattern.permute.xlu0 0
      %1716 = vperm.xlu0 %1715, %v1688
      %v1717 = vpop.permute.xlu0 %1716
      %1718 = vset.pattern.permute.xlu0 0
      %1719 = vperm.xlu0 %1718, %v1689
      %v1720 = vpop.permute.xlu0 %1719
      %1721 = vset.pattern.permute.xlu0 0
      %1722 = vperm.xlu0 %1721, %v1690
      %v1723 = vpop.permute.xlu0 %1722
      %1724 = vset.pattern.permute.xlu0 0
      %1725 = vperm.xlu0 %1724, %v1691
      %v1726 = vpop.permute.xlu0 %1725
      %1727 = vset.pattern.permute.xlu0 0
      %1728 = vperm.xlu0 %1727, %v1692
      %v1729 = vpop.permute.xlu0 %1728
      %1730 = vset.pattern.permute.xlu0 0
      %1731 = vperm.xlu0 %1730, %v1693
      %v1732 = vpop.permute.xlu0 %1731
      %1733 = vset.pattern.permute.xlu0 0
      %1734 = vperm.xlu0 %1733, %v1694
      %v1735 = vpop.permute.xlu0 %1734
      %1736 = vset.pattern.permute.xlu0 0
      %1737 = vperm.xlu0 %1736, %v1695
      %v1738 = vpop.permute.xlu0 %1737
      %1739 = vset.pattern.permute.xlu0 0
      %1740 = vperm.xlu0 %1739, %v1696
      %v1741 = vpop.permute.xlu0 %1740
      %1742 = vset.pattern.permute.xlu0 0
      %1743 = vperm.xlu0 %1742, %v1697
      %v1744 = vpop.permute.xlu0 %1743
      %1745 = vset.pattern.permute.xlu0 0
      %1746 = vperm.xlu0 %1745, %v1698
      %v1747 = vpop.permute.xlu0 %1746
      %v1748 = vperm.slane %v1699, 0
      %v1749 = vmul.u32 %v1702, %v1748
      %v1750 = vmul.u32 %v1705, %v1748
      %v1751 = vmul.u32 %v1708, %v1748
      %v1752 = vmul.u32 %v1711, %v1748
      %v1753 = vmul.u32 %v1714, %v1748
      %v1754 = vmul.u32 %v1717, %v1748
      %v1755 = vmul.u32 %v1720, %v1748
      %v1756 = vmul.u32 %v1723, %v1748
      %v1757 = vmul.u32 %v1726, %v1748
      %v1758 = vmul.u32 %v1729, %v1748
      %v1759 = vmul.u32 %v1732, %v1748
      %v1760 = vmul.u32 %v1735, %v1748
      %v1761 = vmul.u32 %v1738, %v1748
      %v1762 = vmul.u32 %v1741, %v1748
      %v1763 = vmul.u32 %v1744, %v1748
      %v1764 = vmul.u32 %v1747, %v1748
      %v1765 = vld [vmem:[%s200] sm:$0xff]
      %v1766 = vld [vmem:[%s200 + $0x8] sm:$0xff]
      %v1767 = vld [vmem:[%s200 + $0x10] sm:$0xff]
      %v1768 = vld [vmem:[%s200 + $0x18] sm:$0xff]
      %v1769 = vld [vmem:[%s200 + $0x20] sm:$0xff]
      %v1770 = vld [vmem:[%s200 + $0x28] sm:$0xff]
      %v1771 = vld [vmem:[%s200 + $0x30] sm:$0xff]
      %v1772 = vld [vmem:[%s200 + $0x38] sm:$0xff]
      %v1773 = vld [vmem:[%s200 + $0x40] sm:$0xff]
      %v1774 = vld [vmem:[%s200 + $0x48] sm:$0xff]
      %v1775 = vld [vmem:[%s200 + $0x50] sm:$0xff]
      %v1776 = vld [vmem:[%s200 + $0x58] sm:$0xff]
      %v1777 = vld [vmem:[%s200 + $0x60] sm:$0xff]
      %v1778 = vld [vmem:[%s200 + $0x68] sm:$0xff]
      %v1779 = vld [vmem:[%s200 + $0x70] sm:$0xff]
      %v1780 = vld [vmem:[%s200 + $0x78] sm:$0xff]
      %v1781 = vld [vmem:[%s208] sm:$0x1]
      %1782 = vset.pattern.permute.xlu0 0
      %1783 = vperm.xlu0 %1782, %v1765
      %v1784 = vpop.permute.xlu0 %1783
      %1785 = vset.pattern.permute.xlu0 0
      %1786 = vperm.xlu0 %1785, %v1766
      %v1787 = vpop.permute.xlu0 %1786
      %1788 = vset.pattern.permute.xlu0 0
      %1789 = vperm.xlu0 %1788, %v1767
      %v1790 = vpop.permute.xlu0 %1789
      %1791 = vset.pattern.permute.xlu0 0
      %1792 = vperm.xlu0 %1791, %v1768
      %v1793 = vpop.permute.xlu0 %1792
      %1794 = vset.pattern.permute.xlu0 0
      %1795 = vperm.xlu0 %1794, %v1769
      %v1796 = vpop.permute.xlu0 %1795
      %1797 = vset.pattern.permute.xlu0 0
      %1798 = vperm.xlu0 %1797, %v1770
      %v1799 = vpop.permute.xlu0 %1798
      %1800 = vset.pattern.permute.xlu0 0
      %1801 = vperm.xlu0 %1800, %v1771
      %v1802 = vpop.permute.xlu0 %1801
      %1803 = vset.pattern.permute.xlu0 0
      %1804 = vperm.xlu0 %1803, %v1772
      %v1805 = vpop.permute.xlu0 %1804
      %1806 = vset.pattern.permute.xlu0 0
      %1807 = vperm.xlu0 %1806, %v1773
      %v1808 = vpop.permute.xlu0 %1807
      %1809 = vset.pattern.permute.xlu0 0
      %1810 = vperm.xlu0 %1809, %v1774
      %v1811 = vpop.permute.xlu0 %1810
      %1812 = vset.pattern.permute.xlu0 0
      %1813 = vperm.xlu0 %1812, %v1775
      %v1814 = vpop.permute.xlu0 %1813
      %1815 = vset.pattern.permute.xlu0 0
      %1816 = vperm.xlu0 %1815, %v1776
      %v1817 = vpop.permute.xlu0 %1816
      %1818 = vset.pattern.permute.xlu0 0
      %1819 = vperm.xlu0 %1818, %v1777
      %v1820 = vpop.permute.xlu0 %1819
      %1821 = vset.pattern.permute.xlu0 0
      %1822 = vperm.xlu0 %1821, %v1778
      %v1823 = vpop.permute.xlu0 %1822
      %1824 = vset.pattern.permute.xlu0 0
      %1825 = vperm.xlu0 %1824, %v1779
      %v1826 = vpop.permute.xlu0 %1825
      %1827 = vset.pattern.permute.xlu0 0
      %1828 = vperm.xlu0 %1827, %v1780
      %v1829 = vpop.permute.xlu0 %1828
      %v1830 = vperm.slane %v1781, 0
      %vm1831 = vcmp.eq.s32.totalorder %v1784, %v1830
      %vm1832 = vcmp.eq.s32.totalorder %v1787, %v1830
      %vm1833 = vcmp.eq.s32.totalorder %v1790, %v1830
      %vm1834 = vcmp.eq.s32.totalorder %v1793, %v1830
      %vm1835 = vcmp.eq.s32.totalorder %v1796, %v1830
      %vm1836 = vcmp.eq.s32.totalorder %v1799, %v1830
      %vm1837 = vcmp.eq.s32.totalorder %v1802, %v1830
      %vm1838 = vcmp.eq.s32.totalorder %v1805, %v1830
      %vm1839 = vcmp.eq.s32.totalorder %v1808, %v1830
      %vm1840 = vcmp.eq.s32.totalorder %v1811, %v1830
      %vm1841 = vcmp.eq.s32.totalorder %v1814, %v1830
      %vm1842 = vcmp.eq.s32.totalorder %v1817, %v1830
      %vm1843 = vcmp.eq.s32.totalorder %v1820, %v1830
      %vm1844 = vcmp.eq.s32.totalorder %v1823, %v1830
      %vm1845 = vcmp.eq.s32.totalorder %v1826, %v1830
      %vm1846 = vcmp.eq.s32.totalorder %v1829, %v1830
      %vm1847 = vcmp.eq.s32.totalorder %v1749, 3
      %vm1848 = vcmp.eq.s32.totalorder %v1750, 3
      %vm1849 = vcmp.eq.s32.totalorder %v1751, 3
      %vm1850 = vcmp.eq.s32.totalorder %v1752, 3
      %vm1851 = vcmp.eq.s32.totalorder %v1753, 3
      %vm1852 = vcmp.eq.s32.totalorder %v1754, 3
      %vm1853 = vcmp.eq.s32.totalorder %v1755, 3
      %vm1854 = vcmp.eq.s32.totalorder %v1756, 3
      %vm1855 = vcmp.eq.s32.totalorder %v1757, 3
      %vm1856 = vcmp.eq.s32.totalorder %v1758, 3
      %vm1857 = vcmp.eq.s32.totalorder %v1759, 3
      %vm1858 = vcmp.eq.s32.totalorder %v1760, 3
      %vm1859 = vcmp.eq.s32.totalorder %v1761, 3
      %vm1860 = vcmp.eq.s32.totalorder %v1762, 3
      %vm1861 = vcmp.eq.s32.totalorder %v1763, 3
      %vm1862 = vcmp.eq.s32.totalorder %v1764, 3
      %vm1863 = vcmp.eq.s32.totalorder %v1749, 6
      %vm1864 = vcmp.eq.s32.totalorder %v1750, 6
      %vm1865 = vcmp.eq.s32.totalorder %v1751, 6
      %vm1866 = vcmp.eq.s32.totalorder %v1752, 6
      %vm1867 = vcmp.eq.s32.totalorder %v1753, 6
      %vm1868 = vcmp.eq.s32.totalorder %v1754, 6
      %vm1869 = vcmp.eq.s32.totalorder %v1755, 6
      %vm1870 = vcmp.eq.s32.totalorder %v1756, 6
      %vm1871 = vcmp.eq.s32.totalorder %v1757, 6
      %vm1872 = vcmp.eq.s32.totalorder %v1758, 6
      %vm1873 = vcmp.eq.s32.totalorder %v1759, 6
      %vm1874 = vcmp.eq.s32.totalorder %v1760, 6
      %vm1875 = vcmp.eq.s32.totalorder %v1761, 6
      %vm1876 = vcmp.eq.s32.totalorder %v1762, 6
      %vm1877 = vcmp.eq.s32.totalorder %v1763, 6
      %vm1878 = vcmp.eq.s32.totalorder %v1764, 6
      %vm1879 = vmor %vm1847, %vm1863
      %vm1880 = vmor %vm1848, %vm1864
      %vm1881 = vmor %vm1849, %vm1865
      %vm1882 = vmor %vm1850, %vm1866
      %vm1883 = vmor %vm1851, %vm1867
      %vm1884 = vmor %vm1852, %vm1868
      %vm1885 = vmor %vm1853, %vm1869
      %vm1886 = vmor %vm1854, %vm1870
      %vm1887 = vmor %vm1855, %vm1871
      %vm1888 = vmor %vm1856, %vm1872
      %vm1889 = vmor %vm1857, %vm1873
      %vm1890 = vmor %vm1858, %vm1874
      %vm1891 = vmor %vm1859, %vm1875
      %vm1892 = vmor %vm1860, %vm1876
      %vm1893 = vmor %vm1861, %vm1877
      %vm1894 = vmor %vm1862, %vm1878
      %vm1895 = vmand %vm1831, %vm1879
      %vm1896 = vmand %vm1832, %vm1880
      %vm1897 = vmand %vm1833, %vm1881
      %vm1898 = vmand %vm1834, %vm1882
      %vm1899 = vmand %vm1835, %vm1883
      %vm1900 = vmand %vm1836, %vm1884
      %vm1901 = vmand %vm1837, %vm1885
      %vm1902 = vmand %vm1838, %vm1886
      %vm1903 = vmand %vm1839, %vm1887
      %vm1904 = vmand %vm1840, %vm1888
      %vm1905 = vmand %vm1841, %vm1889
      %vm1906 = vmand %vm1842, %vm1890
      %vm1907 = vmand %vm1843, %vm1891
      %vm1908 = vmand %vm1844, %vm1892
      %vm1909 = vmand %vm1845, %vm1893
      %vm1910 = vmand %vm1846, %vm1894
      %v1911 = vsel %vm1895, %v1502, 0.0
      %v1912 = vsel %vm1896, %v1514, 0.0
      %v1913 = vsel %vm1897, %v1526, 0.0
      %v1914 = vsel %vm1898, %v1538, 0.0
      %v1915 = vsel %vm1899, %v1550, 0.0
      %v1916 = vsel %vm1900, %v1562, 0.0
      %v1917 = vsel %vm1901, %v1574, 0.0
      %v1918 = vsel %vm1902, %v1586, 0.0
      %v1919 = vsel %vm1903, %v1598, 0.0
      %v1920 = vsel %vm1904, %v1610, 0.0
      %v1921 = vsel %vm1905, %v1622, 0.0
      %v1922 = vsel %vm1906, %v1634, 0.0
      %v1923 = vsel %vm1907, %v1646, 0.0
      %v1924 = vsel %vm1908, %v1658, 0.0
      %v1925 = vsel %vm1909, %v1670, 0.0
      %v1926 = vsel %vm1910, %v1682, 0.0
      %v1927 = vadd.f32 %v1911, %v1912
      %v1928 = vadd.f32 %v1913, %v1914
      %v1929 = vadd.f32 %v1915, %v1916
      %v1930 = vadd.f32 %v1917, %v1918
      %v1931 = vadd.f32 %v1919, %v1920
      %v1932 = vadd.f32 %v1921, %v1922
      %v1933 = vadd.f32 %v1923, %v1924
      %v1934 = vadd.f32 %v1925, %v1926
      %v1935 = vadd.f32 %v1927, %v1928
      %v1936 = vadd.f32 %v1929, %v1930
      %v1937 = vadd.f32 %v1931, %v1932
      %v1938 = vadd.f32 %v1933, %v1934
      %v1939 = vadd.f32 %v1935, %v1936
      %v1940 = vadd.f32 %v1937, %v1938
      %v1941 = vadd.f32 %v1939, %v1940
      %v1942 = vld [vmem:[#allocation6] sm:$0xff]
      %v1943 = vadd.f32 %v1942, %v1941
      %1944 = vst [vmem:[#allocation6] sm:$0xff] %v1943
    $region41: #{tpu_custom_call.1} parent=1 // pred_fallthru
      _
    // Predicated region
    $region42: #{tpu_custom_call.1} parent=1 // pred_check
      _
    $region43: #{tpu_custom_call.1} parent=1 // pred_check_branch
      %1946 = sbr.rel (0) target = $region45
    $region44: #{tpu_custom_call.1} parent=1 // pred_region
      %s1947 = sadd.s32 0, 0
      %s1948 = sld [smem:[#allocation3 + %s1947]]
      %1950 = vsyncadd [#allocation7], 0
      %s1951 = smul.addr %s1948, 8
      %s1952 = scalar_lea.hbm %s11, %s1951
      %s1954 = sshll.u32 [#allocation6], 4
      %s1955 = int_to_ptr.vmem [resolvable:$true] %s1954
      %s1956 = sshll.u32 %s1952, 4
      %s1957 = int_to_ptr.hbm [resolvable:$true] %s1956
      %1959 = dma.vmem_to_hbm [thread:$0]  %s1955, 128, %s1957, [#allocation7]
    $region45: #{tpu_custom_call.1} parent=1 // pred_fallthru
      _
    // Predicated region
    $region46: #{tpu_custom_call.1} parent=1 // pred_check
      _
    $region47: #{tpu_custom_call.1} parent=1 // pred_check_branch
      %1961 = sbr.rel (0) target = $region49
    $region48: #{tpu_custom_call.1} parent=1 // pred_region
      %1963 = dma.done [#allocation7], 128
    $region49: #{tpu_custom_call.1} parent=1 // pred_fallthru
      _
    %1964 = vsyncpa [#allocation7], 1

</llo_original>
